<compile_context>
chip_gen: v6e
topology: v6e:2x2x1
jax: 0.10.0
libtpu: 0.0.40
codegen_flags: <defaults>
</compile_context>

<pallas_src>
import functools
import math

import jax
import jax.numpy as jnp
from jax import lax
from jax.experimental import pallas as pl
from jax.experimental.pallas import tpu as pltpu


# ---------------------------------------------------------------------------
# Kernel: incremental KV projection + flash-style causal attention (all
# heads) + fused output projection, for one (batch, q-row-block) grid point.
# ---------------------------------------------------------------------------
def _mha_kernel(x_ref, wq_ref, bq_ref, wkv_ref, bkv_ref, wp_ref, bp_ref,
                o_ref, kv_ref, *, num_heads, head_dim, tq):
    qi = pl.program_id(1)
    D = x_ref.shape[2]
    H, hd, TQ = num_heads, head_dim, tq
    cdt = kv_ref.dtype
    scale = 1.0 / math.sqrt(float(hd))

    x_blk = x_ref[0]                                             # (TQ, D)

    # --- Incremental K/V projection: only this block's rows.  Causal
    #     attention at block qi never reads KV rows >= (qi+1)*TQ, and the
    #     qi axis is sequential ("arbitrary"), so the cache is always valid.
    kv_blk = (jnp.dot(x_blk, wkv_ref[...], preferred_element_type=jnp.float32)
              + bkv_ref[...])
    kv_ref[qi] = kv_blk.astype(cdt)

    # --- Q projection; fold 1/sqrt(hd) once into q (f32), then cast to bf16
    #     MXU input.  Replaces H scaling passes over (TQ, TKV) score blocks.
    q = (jnp.dot(x_blk, wq_ref[...], preferred_element_type=jnp.float32)
         + bq_ref[...]) * scale
    q = q.astype(cdt)
    q_heads = [q[:, h * hd:(h + 1) * hd] for h in range(H)]      # value slices

    # Causal-mask iotas hoisted out of the kv-block loop.
    row = lax.broadcasted_iota(jnp.int32, (TQ, TQ), 0) + qi * TQ
    col = lax.broadcasted_iota(jnp.int32, (TQ, TQ), 1)
    neg_inf = jnp.float32(-jnp.inf)

    # --- Flash-style online softmax over kv blocks 0..qi.  Blocks > qi are
    #     never touched (causal block skipping).  Each KV block is loaded
    #     from the VMEM cache once and shared by all heads.
    def kv_step(j, carry):
        ms, ls, accs = carry
        kv_j = kv_ref[j]                                         # (TQ, 2D)
        mask = (col + j * TQ) <= row
        new_ms, new_ls, new_accs = [], [], []
        for h in range(H):                                       # static loop
            k_h = kv_j[:, h * hd:(h + 1) * hd]                   # (TQ, hd)
            v_h = kv_j[:, D + h * hd:D + (h + 1) * hd]           # (TQ, hd)
            # q @ k^T without materializing a transposed copy of k.
            s = lax.dot_general(q_heads[h], k_h, (((1,), (1,)), ((), ())),
                                preferred_element_type=jnp.float32)
            s = jnp.where(mask, s, neg_inf)
            m_new = jnp.maximum(ms[h], jnp.max(s, axis=-1, keepdims=True))
            alpha = jnp.exp(ms[h] - m_new)
            p = jnp.exp(s - m_new)                               # f32 softmax
            new_ms.append(m_new)
            new_ls.append(alpha * ls[h] + jnp.sum(p, axis=-1, keepdims=True))
            new_accs.append(alpha * accs[h]
                            + jnp.dot(p.astype(cdt), v_h,
                                      preferred_element_type=jnp.float32))
        return new_ms, new_ls, new_accs

    carry0 = ([jnp.full((TQ, 1), -jnp.inf, jnp.float32) for _ in range(H)],
              [jnp.zeros((TQ, 1), jnp.float32) for _ in range(H)],
              [jnp.zeros((TQ, hd), jnp.float32) for _ in range(H)])
    ms, ls, accs = lax.fori_loop(0, qi + 1, kv_step, carry0)

    # Normalize (EUP reciprocal), concat heads (value-level, lane-dense) and
    # fuse the output projection into the same kernel.
    outs = [(accs[h] * pl.reciprocal(ls[h], approx=True)).astype(cdt)
            for h in range(H)]
    concat = jnp.concatenate(outs, axis=-1)                      # (TQ, D)
    out = (jnp.dot(concat, wp_ref[...], preferred_element_type=jnp.float32)
           + bp_ref[...])
    o_ref[0] = out.astype(o_ref.dtype)


# ---------------------------------------------------------------------------
# Wrapper
# ---------------------------------------------------------------------------
def multi_head_attention(x, w_q, b_q, w_kv, b_kv, w_proj, b_proj, *,
                         num_heads, q_block=256, compute_dtype=jnp.bfloat16,
                         out_dtype=None, single_buffer_weights=True):
    """Causal multi-head attention, forward only (dropout = identity)."""
    B, T, D = x.shape
    assert D % num_heads == 0
    hd = D // num_heads
    out_dtype = x.dtype if out_dtype is None else out_dtype

    TQ = min(q_block, T)
    assert T % TQ == 0, "sequence length must be divisible by the q-block size"
    NQ = T // TQ

    # bf16 MXU inputs (halves HBM/VMEM bytes); accumulation stays f32 in-kernel.
    xc = x.astype(compute_dtype)
    wqc = w_q.astype(compute_dtype)
    wkvc = w_kv.astype(compute_dtype)
    wpc = w_proj.astype(compute_dtype)
    bq = b_q.astype(jnp.float32)
    bkv = b_kv.astype(jnp.float32)
    bp = b_proj.astype(jnp.float32)

    kernel = functools.partial(_mha_kernel, num_heads=num_heads,
                               head_dim=hd, tq=TQ)
    cbytes = jnp.dtype(compute_dtype).itemsize
    obytes = jnp.dtype(out_dtype).itemsize

    def run(single_buffer):
        def const_spec(shape):
            # Constant-index weight/bias blocks: single-buffer them so they
            # do not pay 2x VMEM for double buffering.
            idx = lambda b, qi: (0,) * len(shape)
            if single_buffer:
                return pl.BlockSpec(shape, idx, pipeline_mode=pl.Buffered(1))
            return pl.BlockSpec(shape, idx)

        wbufs = 1 if single_buffer else 2
        est = (T * 2 * D * cbytes                          # KV cache scratch
               + 2 * TQ * D * cbytes                       # x block (2 buffers)
               + 2 * TQ * D * obytes                       # out block (2 buffers)
               + wbufs * 4 * D * D * cbytes                # w_q + w_kv + w_proj
               + wbufs * 4 * D * 4                         # biases (f32)
               + 3 * TQ * TQ * 4                           # score temporaries
               + 2 * num_heads * (TQ * hd + 2 * TQ) * 4    # online-softmax state
               + 2 * TQ * 2 * D * cbytes                   # kv block load
               + 4 * TQ * D * 4)                           # q / concat temps
        vmem_limit = int(min(max(est * 3 // 2 + (2 << 20), 16 << 20), 64 << 20))

        grid_spec = pltpu.PrefetchScalarGridSpec(
            num_scalar_prefetch=0,
            grid=(B, NQ),
            in_specs=[
                pl.BlockSpec((1, TQ, D), lambda b, qi: (b, qi, 0)),  # x q-block
                const_spec((D, D)),            # w_q
                const_spec((1, D)),            # b_q
                const_spec((D, 2 * D)),        # w_kv
                const_spec((1, 2 * D)),        # b_kv
                const_spec((D, D)),            # w_proj
                const_spec((1, D)),            # b_proj
            ],
            out_specs=pl.BlockSpec((1, TQ, D), lambda b, qi: (b, qi, 0)),
            # Incrementally-filled K|V cache, reused across q blocks of a batch.
            scratch_shapes=[pltpu.VMEM((NQ, TQ, 2 * D), compute_dtype)],
        )
        return pl.pallas_call(
            kernel,
            out_shape=jax.ShapeDtypeStruct((B, T, D), out_dtype),
            grid_spec=grid_spec,
            compiler_params=pltpu.CompilerParams(
                # batch axis shards across TensorCores; the q-block axis
                # carries the KV cache scratch so it must be "arbitrary".
                dimension_semantics=("parallel", "arbitrary"),
                vmem_limit_bytes=vmem_limit),
        )(xc, wqc, bq, wkvc, bkv, wpc, bp)

    if single_buffer_weights:
        try:
            return run(True)
        except Exception:
            pass  # installed JAX rejected Buffered(1); fall back to defaults
    return run(False)


# ---------------------------------------------------------------------------
# Pure-JAX f32 reference (matches the PyTorch module in eval mode)
# ---------------------------------------------------------------------------
def reference(x, w_q, b_q, w_kv, b_kv, w_proj, b_proj, *, num_heads):
    B, T, D = x.shape
    hd = D // num_heads
    q = x @ w_q + b_q
    kv = x @ w_kv + b_kv
    k, v = kv[..., :D], kv[..., D:]
    row = jnp.arange(T)[:, None]
    col = jnp.arange(T)[None, :]
    outs = []
    for h in range(num_heads):
        qh = q[..., h * hd:(h + 1) * hd]
        kh = k[..., h * hd:(h + 1) * hd]
        vh = v[..., h * hd:(h + 1) * hd]
        s = jnp.einsum('btd,bsd->bts', qh, kh) / math.sqrt(hd)
        s = jnp.where(col <= row, s, -jnp.inf)
        p = jax.nn.softmax(s, axis=-1)
        outs.append(jnp.einsum('bts,bsd->btd', p, vh))
    concat = jnp.concatenate(outs, axis=-1)
    return concat @ w_proj + b_proj


if __name__ == "__main__":
    def make_params(key, D):
        keys = jax.random.split(key, 6)
        scale = 0.05
        return dict(
            w_q=jax.random.normal(keys[0], (D, D), jnp.float32) * scale,
            b_q=jax.random.normal(keys[1], (1, D), jnp.float32) * scale,
            w_kv=jax.random.normal(keys[2], (D, 2 * D), jnp.float32) * scale,
            b_kv=jax.random.normal(keys[3], (1, 2 * D), jnp.float32) * scale,
            w_proj=jax.random.normal(keys[4], (D, D), jnp.float32) * scale,
            b_proj=jax.random.normal(keys[5], (1, D), jnp.float32) * scale,
        )

    key = jax.random.PRNGKey(0)
    kp1, kx1, kp2, kx2 = jax.random.split(key, 4)

    # Config 1: d_model=32, num_heads=4 (head_dim=8), seq=8, batch=2
    # (single q/kv block).
    B, T, D, H = 2, 8, 32, 4
    params1 = make_params(kp1, D)
    x1 = jax.random.normal(kx1, (B, T, D), dtype=jnp.float32)
    out1 = jax.block_until_ready(
        multi_head_attention(x1, **params1, num_heads=H))
    ref1 = reference(x1, **params1, num_heads=H)
    assert out1.shape == (B, T, D)
    # bf16 MXU inputs + approx EUP reciprocal -> relaxed tolerance vs f32 ref.
    assert jnp.allclose(out1, ref1, atol=2e-2, rtol=2e-2), "mismatch (cfg 1)"

    # Config 2: seq=16 with q_block=8 to exercise the incremental KV cache and
    # the multi-block online-softmax (flash) path.
    B, T, D, H = 2, 16, 32, 4
    params2 = make_params(kp2, D)
    x2 = jax.random.normal(kx2, (B, T, D), dtype=jnp.float32)
    out2 = jax.block_until_ready(
        multi_head_attention(x2, **params2, num_heads=H, q_block=8))
    ref2 = reference(x2, **params2, num_heads=H)
    assert out2.shape == (B, T, D)
    assert jnp.allclose(out2, ref2, atol=2e-2, rtol=2e-2), "mismatch (cfg 2)"

    print("KERNEL_OK")
</pallas_src>

<mosaic_0001>
module attributes {stable_mosaic.version = 11 : i64} {
  func.func @_mha_kernel(%arg0: i32, %arg1: i32, %arg2: memref<1x8x32xbf16, #tpu.memory_space<vmem>>, %arg3: memref<32x32xbf16, #tpu.memory_space<vmem>>, %arg4: memref<1x32xf32, #tpu.memory_space<vmem>>, %arg5: memref<32x64xbf16, #tpu.memory_space<vmem>>, %arg6: memref<1x64xf32, #tpu.memory_space<vmem>>, %arg7: memref<32x32xbf16, #tpu.memory_space<vmem>>, %arg8: memref<1x32xf32, #tpu.memory_space<vmem>>, %arg9: memref<1x8x32xf32, #tpu.memory_space<vmem>>, %arg10: memref<1x8x64xbf16, #tpu.memory_space<vmem>>) attributes {dimension_semantics = [#tpu.dimension_semantics<parallel>, #tpu.dimension_semantics<arbitrary>], iteration_bounds = array<i64: 2, 1>, scalar_prefetch = 0 : i64, scratch_operands = 1 : i64, tpu.core_type = #tpu.core_type<tc>, window_params = [{transform_indices = @transform_0, window_bounds = array<i64: 1, 8, 32>}, {pipeline_mode = #tpu.pipeline_mode<synchronous>, transform_indices = @transform_1, window_bounds = array<i64: 32, 32>}, {pipeline_mode = #tpu.pipeline_mode<synchronous>, transform_indices = @transform_2, window_bounds = array<i64: 1, 32>}, {pipeline_mode = #tpu.pipeline_mode<synchronous>, transform_indices = @transform_3, window_bounds = array<i64: 32, 64>}, {pipeline_mode = #tpu.pipeline_mode<synchronous>, transform_indices = @transform_4, window_bounds = array<i64: 1, 64>}, {pipeline_mode = #tpu.pipeline_mode<synchronous>, transform_indices = @transform_5, window_bounds = array<i64: 32, 32>}, {pipeline_mode = #tpu.pipeline_mode<synchronous>, transform_indices = @transform_6, window_bounds = array<i64: 1, 32>}, {transform_indices = @transform_7, window_bounds = array<i64: 1, 8, 32>}]} {
    %c0 = arith.constant 0 : index
    %c0_0 = arith.constant 0 : index
    %c0_1 = arith.constant 0 : index
    %0 = vector.load %arg2[%c0, %c0_0, %c0_1] : memref<1x8x32xbf16, #tpu.memory_space<vmem>>, vector<1x8x32xbf16>
    %1 = vector.shape_cast %0 : vector<1x8x32xbf16> to vector<8x32xbf16>
    %c0_2 = arith.constant 0 : index
    %c0_3 = arith.constant 0 : index
    %2 = vector.load %arg5[%c0_2, %c0_3] : memref<32x64xbf16, #tpu.memory_space<vmem>>, vector<32x64xbf16>
    %cst = arith.constant dense<0.000000e+00> : vector<8x64xf32>
    %3 = tpu.matmul %1, %2, %cst {dimension_numbers = #tpu.dot_dimension_numbers<[1], [0], [0], [1], [0, 0, 1, 1], [], []>} : vector<8x32xbf16>, vector<32x64xbf16>, vector<8x64xf32> -> vector<8x64xf32>
    %c0_4 = arith.constant 0 : index
    %c0_5 = arith.constant 0 : index
    %4 = vector.load %arg6[%c0_4, %c0_5] : memref<1x64xf32, #tpu.memory_space<vmem>>, vector<1x64xf32>
    %5 = vector.broadcast %4 : vector<1x64xf32> to vector<8x64xf32>
    %6 = arith.addf %3, %5 : vector<8x64xf32>
    %7 = arith.truncf %6 : vector<8x64xf32> to vector<8x64xbf16>
    %8 = arith.index_cast %arg1 : i32 to index
    %c0_6 = arith.constant 0 : index
    %c0_7 = arith.constant 0 : index
    %9 = vector.load %arg10[%8, %c0_6, %c0_7] : memref<1x8x64xbf16, #tpu.memory_space<vmem>>, vector<1x8x64xbf16>
    %10 = vector.shape_cast %9 : vector<1x8x64xbf16> to vector<8x64xbf16>
    %11 = vector.shape_cast %7 : vector<8x64xbf16> to vector<1x8x64xbf16>
    tpu.vector_store %arg10[%8, %c0_6, %c0_7], %11 {strides = array<i32>} : memref<1x8x64xbf16, #tpu.memory_space<vmem>>, vector<1x8x64xbf16>,
    %c0_8 = arith.constant 0 : index
    %c0_9 = arith.constant 0 : index
    %12 = vector.load %arg3[%c0_8, %c0_9] : memref<32x32xbf16, #tpu.memory_space<vmem>>, vector<32x32xbf16>
    %cst_10 = arith.constant dense<0.000000e+00> : vector<8x32xf32>
    %13 = tpu.matmul %1, %12, %cst_10 {dimension_numbers = #tpu.dot_dimension_numbers<[1], [0], [0], [1], [0, 0, 1, 1], [], []>} : vector<8x32xbf16>, vector<32x32xbf16>, vector<8x32xf32> -> vector<8x32xf32>
    %c0_11 = arith.constant 0 : index
    %c0_12 = arith.constant 0 : index
    %14 = vector.load %arg4[%c0_11, %c0_12] : memref<1x32xf32, #tpu.memory_space<vmem>>, vector<1x32xf32>
    %15 = vector.broadcast %14 : vector<1x32xf32> to vector<8x32xf32>
    %16 = arith.addf %13, %15 : vector<8x32xf32>
    %cst_13 = arith.constant 0.353553385 : f32
    %17 = vector.broadcast %cst_13 : f32 to vector<8x32xf32>
    %18 = arith.mulf %16, %17 : vector<8x32xf32>
    %19 = arith.truncf %18 : vector<8x32xf32> to vector<8x32xbf16>
    %20 = vector.extract_strided_slice %19 {offsets = [0, 0], sizes = [8, 8], strides = [1, 1]} : vector<8x32xbf16> to vector<8x8xbf16>
    %21 = vector.extract_strided_slice %19 {offsets = [0, 8], sizes = [8, 8], strides = [1, 1]} : vector<8x32xbf16> to vector<8x8xbf16>
    %22 = vector.extract_strided_slice %19 {offsets = [0, 16], sizes = [8, 8], strides = [1, 1]} : vector<8x32xbf16> to vector<8x8xbf16>
    %23 = vector.extract_strided_slice %19 {offsets = [0, 24], sizes = [8, 8], strides = [1, 1]} : vector<8x32xbf16> to vector<8x8xbf16>
    %24 = tpu.iota {dimensions = array<i32: 0>} : vector<8x8xi32>
    %c8_i32 = arith.constant 8 : i32
    %25 = arith.muli %arg1, %c8_i32 : i32
    %26 = vector.broadcast %25 : i32 to vector<8x8xi32>
    %27 = arith.addi %24, %26 : vector<8x8xi32>
    %28 = tpu.iota {dimensions = array<i32: 1>} : vector<8x8xi32>
    %cst_14 = arith.constant 0xFF800000 : f32
    %29 = vector.broadcast %cst_14 : f32 to vector<8x1xf32>
    %cst_15 = arith.constant 0xFF800000 : f32
    %30 = vector.broadcast %cst_15 : f32 to vector<8x1xf32>
    %cst_16 = arith.constant 0xFF800000 : f32
    %31 = vector.broadcast %cst_16 : f32 to vector<8x1xf32>
    %cst_17 = arith.constant 0xFF800000 : f32
    %32 = vector.broadcast %cst_17 : f32 to vector<8x1xf32>
    %cst_18 = arith.constant 0.000000e+00 : f32
    %33 = vector.broadcast %cst_18 : f32 to vector<8x1xf32>
    %cst_19 = arith.constant 0.000000e+00 : f32
    %34 = vector.broadcast %cst_19 : f32 to vector<8x1xf32>
    %cst_20 = arith.constant 0.000000e+00 : f32
    %35 = vector.broadcast %cst_20 : f32 to vector<8x1xf32>
    %cst_21 = arith.constant 0.000000e+00 : f32
    %36 = vector.broadcast %cst_21 : f32 to vector<8x1xf32>
    %cst_22 = arith.constant 0.000000e+00 : f32
    %37 = vector.broadcast %cst_22 : f32 to vector<8x8xf32>
    %cst_23 = arith.constant 0.000000e+00 : f32
    %38 = vector.broadcast %cst_23 : f32 to vector<8x8xf32>
    %cst_24 = arith.constant 0.000000e+00 : f32
    %39 = vector.broadcast %cst_24 : f32 to vector<8x8xf32>
    %cst_25 = arith.constant 0.000000e+00 : f32
    %40 = vector.broadcast %cst_25 : f32 to vector<8x8xf32>
    %c1_i32 = arith.constant 1 : i32
    %41 = arith.addi %arg1, %c1_i32 : i32
    %cst_26 = arith.constant 0xFF800000 : f32
    %c0_i32 = arith.constant 0 : i32
    %42 = arith.subi %41, %c0_i32 : i32
    %43 = arith.addi %c0_i32, %42 : i32
    %c1_i32_27 = arith.constant 1 : i32
    %44:12 = scf.for %arg11 = %c0_i32 to %43 step %c1_i32_27 iter_args(%arg12 = %29, %arg13 = %30, %arg14 = %31, %arg15 = %32, %arg16 = %33, %arg17 = %34, %arg18 = %35, %arg19 = %36, %arg20 = %37, %arg21 = %38, %arg22 = %39, %arg23 = %40) -> (vector<8x1xf32>, vector<8x1xf32>, vector<8x1xf32>, vector<8x1xf32>, vector<8x1xf32>, vector<8x1xf32>, vector<8x1xf32>, vector<8x1xf32>, vector<8x8xf32>, vector<8x8xf32>, vector<8x8xf32>, vector<8x8xf32>)  : i32 {
      %70 = arith.index_cast %arg11 : i32 to index
      %c0_36 = arith.constant 0 : index
      %c0_37 = arith.constant 0 : index
      %71 = vector.load %arg10[%70, %c0_36, %c0_37] : memref<1x8x64xbf16, #tpu.memory_space<vmem>>, vector<1x8x64xbf16>
      %72 = vector.shape_cast %71 : vector<1x8x64xbf16> to vector<8x64xbf16>
      %c8_i32_38 = arith.constant 8 : i32
      %73 = arith.muli %arg11, %c8_i32_38 : i32
      %74 = vector.broadcast %73 : i32 to vector<8x8xi32>
      %75 = arith.addi %28, %74 : vector<8x8xi32>
      %76 = arith.cmpi sle, %75, %27 : vector<8x8xi32>
      %77 = vector.extract_strided_slice %72 {offsets = [0, 0], sizes = [8, 8], strides = [1, 1]} : vector<8x64xbf16> to vector<8x8xbf16>
      %78 = vector.extract_strided_slice %72 {offsets = [0, 32], sizes = [8, 8], strides = [1, 1]} : vector<8x64xbf16> to vector<8x8xbf16>
      %cst_39 = arith.constant dense<0.000000e+00> : vector<8x8xf32>
      %79 = tpu.matmul %20, %77, %cst_39 {dimension_numbers = #tpu.dot_dimension_numbers<[1], [1], [0], [0], [0, 0, 1, 0], [], []>} : vector<8x8xbf16>, vector<8x8xbf16>, vector<8x8xf32> -> vector<8x8xf32>
      %80 = vector.broadcast %cst_26 : f32 to vector<8x8xf32>
      %81 = arith.select %76, %79, %80 : vector<8x8xi1>, vector<8x8xf32>
      %cst_40 = arith.constant dense<0xFF800000> : vector<8xf32>
      %82 = vector.multi_reduction <maximumf>, %81, %cst_40 [1] : vector<8x8xf32> to vector<8xf32>
      %83 = vector.shape_cast %82 : vector<8xf32> to vector<8x1xf32>
      %84 = arith.maximumf %arg12, %83 : vector<8x1xf32>
      %85 = arith.subf %arg12, %84 : vector<8x1xf32>
      %86 = math.exp %85 : vector<8x1xf32>
      %87 = vector.broadcast %84 : vector<8x1xf32> to vector<8x8xf32>
      %88 = arith.subf %81, %87 : vector<8x8xf32>
      %89 = math.exp %88 : vector<8x8xf32>
      %90 = arith.mulf %86, %arg16 : vector<8x1xf32>
      %cst_41 = arith.constant dense<0.000000e+00> : vector<8xf32>
      %91 = vector.multi_reduction <add>, %89, %cst_41 [1] : vector<8x8xf32> to vector<8xf32>
      %92 = vector.shape_cast %91 : vector<8xf32> to vector<8x1xf32>
      %93 = arith.addf %90, %92 : vector<8x1xf32>
      %94 = vector.broadcast %86 : vector<8x1xf32> to vector<8x8xf32>
      %95 = arith.mulf %94, %arg20 : vector<8x8xf32>
      %96 = arith.truncf %89 : vector<8x8xf32> to vector<8x8xbf16>
      %cst_42 = arith.constant dense<0.000000e+00> : vector<8x8xf32>
      %97 = tpu.matmul %96, %78, %cst_42 {dimension_numbers = #tpu.dot_dimension_numbers<[1], [0], [0], [1], [0, 0, 1, 1], [], []>} : vector<8x8xbf16>, vector<8x8xbf16>, vector<8x8xf32> -> vector<8x8xf32>
      %98 = arith.addf %95, %97 : vector<8x8xf32>
      %99 = vector.extract_strided_slice %72 {offsets = [0, 8], sizes = [8, 8], strides = [1, 1]} : vector<8x64xbf16> to vector<8x8xbf16>
      %100 = vector.extract_strided_slice %72 {offsets = [0, 40], sizes = [8, 8], strides = [1, 1]} : vector<8x64xbf16> to vector<8x8xbf16>
      %cst_43 = arith.constant dense<0.000000e+00> : vector<8x8xf32>
      %101 = tpu.matmul %21, %99, %cst_43 {dimension_numbers = #tpu.dot_dimension_numbers<[1], [1], [0], [0], [0, 0, 1, 0], [], []>} : vector<8x8xbf16>, vector<8x8xbf16>, vector<8x8xf32> -> vector<8x8xf32>
      %102 = vector.broadcast %cst_26 : f32 to vector<8x8xf32>
      %103 = arith.select %76, %101, %102 : vector<8x8xi1>, vector<8x8xf32>
      %cst_44 = arith.constant dense<0xFF800000> : vector<8xf32>
      %104 = vector.multi_reduction <maximumf>, %103, %cst_44 [1] : vector<8x8xf32> to vector<8xf32>
      %105 = vector.shape_cast %104 : vector<8xf32> to vector<8x1xf32>
      %106 = arith.maximumf %arg13, %105 : vector<8x1xf32>
      %107 = arith.subf %arg13, %106 : vector<8x1xf32>
      %108 = math.exp %107 : vector<8x1xf32>
      %109 = vector.broadcast %106 : vector<8x1xf32> to vector<8x8xf32>
      %110 = arith.subf %103, %109 : vector<8x8xf32>
      %111 = math.exp %110 : vector<8x8xf32>
      %112 = arith.mulf %108, %arg17 : vector<8x1xf32>
      %cst_45 = arith.constant dense<0.000000e+00> : vector<8xf32>
      %113 = vector.multi_reduction <add>, %111, %cst_45 [1] : vector<8x8xf32> to vector<8xf32>
      %114 = vector.shape_cast %113 : vector<8xf32> to vector<8x1xf32>
      %115 = arith.addf %112, %114 : vector<8x1xf32>
      %116 = vector.broadcast %108 : vector<8x1xf32> to vector<8x8xf32>
      %117 = arith.mulf %116, %arg21 : vector<8x8xf32>
      %118 = arith.truncf %111 : vector<8x8xf32> to vector<8x8xbf16>
      %cst_46 = arith.constant dense<0.000000e+00> : vector<8x8xf32>
      %119 = tpu.matmul %118, %100, %cst_46 {dimension_numbers = #tpu.dot_dimension_numbers<[1], [0], [0], [1], [0, 0, 1, 1], [], []>} : vector<8x8xbf16>, vector<8x8xbf16>, vector<8x8xf32> -> vector<8x8xf32>
      %120 = arith.addf %117, %119 : vector<8x8xf32>
      %121 = vector.extract_strided_slice %72 {offsets = [0, 16], sizes = [8, 8], strides = [1, 1]} : vector<8x64xbf16> to vector<8x8xbf16>
      %122 = vector.extract_strided_slice %72 {offsets = [0, 48], sizes = [8, 8], strides = [1, 1]} : vector<8x64xbf16> to vector<8x8xbf16>
      %cst_47 = arith.constant dense<0.000000e+00> : vector<8x8xf32>
      %123 = tpu.matmul %22, %121, %cst_47 {dimension_numbers = #tpu.dot_dimension_numbers<[1], [1], [0], [0], [0, 0, 1, 0], [], []>} : vector<8x8xbf16>, vector<8x8xbf16>, vector<8x8xf32> -> vector<8x8xf32>
      %124 = vector.broadcast %cst_26 : f32 to vector<8x8xf32>
      %125 = arith.select %76, %123, %124 : vector<8x8xi1>, vector<8x8xf32>
      %cst_48 = arith.constant dense<0xFF800000> : vector<8xf32>
      %126 = vector.multi_reduction <maximumf>, %125, %cst_48 [1] : vector<8x8xf32> to vector<8xf32>
      %127 = vector.shape_cast %126 : vector<8xf32> to vector<8x1xf32>
      %128 = arith.maximumf %arg14, %127 : vector<8x1xf32>
      %129 = arith.subf %arg14, %128 : vector<8x1xf32>
      %130 = math.exp %129 : vector<8x1xf32>
      %131 = vector.broadcast %128 : vector<8x1xf32> to vector<8x8xf32>
      %132 = arith.subf %125, %131 : vector<8x8xf32>
      %133 = math.exp %132 : vector<8x8xf32>
      %134 = arith.mulf %130, %arg18 : vector<8x1xf32>
      %cst_49 = arith.constant dense<0.000000e+00> : vector<8xf32>
      %135 = vector.multi_reduction <add>, %133, %cst_49 [1] : vector<8x8xf32> to vector<8xf32>
      %136 = vector.shape_cast %135 : vector<8xf32> to vector<8x1xf32>
      %137 = arith.addf %134, %136 : vector<8x1xf32>
      %138 = vector.broadcast %130 : vector<8x1xf32> to vector<8x8xf32>
      %139 = arith.mulf %138, %arg22 : vector<8x8xf32>
      %140 = arith.truncf %133 : vector<8x8xf32> to vector<8x8xbf16>
      %cst_50 = arith.constant dense<0.000000e+00> : vector<8x8xf32>
      %141 = tpu.matmul %140, %122, %cst_50 {dimension_numbers = #tpu.dot_dimension_numbers<[1], [0], [0], [1], [0, 0, 1, 1], [], []>} : vector<8x8xbf16>, vector<8x8xbf16>, vector<8x8xf32> -> vector<8x8xf32>
      %142 = arith.addf %139, %141 : vector<8x8xf32>
      %143 = vector.extract_strided_slice %72 {offsets = [0, 24], sizes = [8, 8], strides = [1, 1]} : vector<8x64xbf16> to vector<8x8xbf16>
      %144 = vector.extract_strided_slice %72 {offsets = [0, 56], sizes = [8, 8], strides = [1, 1]} : vector<8x64xbf16> to vector<8x8xbf16>
      %cst_51 = arith.constant dense<0.000000e+00> : vector<8x8xf32>
      %145 = tpu.matmul %23, %143, %cst_51 {dimension_numbers = #tpu.dot_dimension_numbers<[1], [1], [0], [0], [0, 0, 1, 0], [], []>} : vector<8x8xbf16>, vector<8x8xbf16>, vector<8x8xf32> -> vector<8x8xf32>
      %146 = vector.broadcast %cst_26 : f32 to vector<8x8xf32>
      %147 = arith.select %76, %145, %146 : vector<8x8xi1>, vector<8x8xf32>
      %cst_52 = arith.constant dense<0xFF800000> : vector<8xf32>
      %148 = vector.multi_reduction <maximumf>, %147, %cst_52 [1] : vector<8x8xf32> to vector<8xf32>
      %149 = vector.shape_cast %148 : vector<8xf32> to vector<8x1xf32>
      %150 = arith.maximumf %arg15, %149 : vector<8x1xf32>
      %151 = arith.subf %arg15, %150 : vector<8x1xf32>
      %152 = math.exp %151 : vector<8x1xf32>
      %153 = vector.broadcast %150 : vector<8x1xf32> to vector<8x8xf32>
      %154 = arith.subf %147, %153 : vector<8x8xf32>
      %155 = math.exp %154 : vector<8x8xf32>
      %156 = arith.mulf %152, %arg19 : vector<8x1xf32>
      %cst_53 = arith.constant dense<0.000000e+00> : vector<8xf32>
      %157 = vector.multi_reduction <add>, %155, %cst_53 [1] : vector<8x8xf32> to vector<8xf32>
      %158 = vector.shape_cast %157 : vector<8xf32> to vector<8x1xf32>
      %159 = arith.addf %156, %158 : vector<8x1xf32>
      %160 = vector.broadcast %152 : vector<8x1xf32> to vector<8x8xf32>
      %161 = arith.mulf %160, %arg23 : vector<8x8xf32>
      %162 = arith.truncf %155 : vector<8x8xf32> to vector<8x8xbf16>
      %cst_54 = arith.constant dense<0.000000e+00> : vector<8x8xf32>
      %163 = tpu.matmul %162, %144, %cst_54 {dimension_numbers = #tpu.dot_dimension_numbers<[1], [0], [0], [1], [0, 0, 1, 1], [], []>} : vector<8x8xbf16>, vector<8x8xbf16>, vector<8x8xf32> -> vector<8x8xf32>
      %164 = arith.addf %161, %163 : vector<8x8xf32>
      scf.yield %84, %106, %128, %150, %93, %115, %137, %159, %98, %120, %142, %164 : vector<8x1xf32>, vector<8x1xf32>, vector<8x1xf32>, vector<8x1xf32>, vector<8x1xf32>, vector<8x1xf32>, vector<8x1xf32>, vector<8x1xf32>, vector<8x8xf32>, vector<8x8xf32>, vector<8x8xf32>, vector<8x8xf32>
    }
    %45 = tpu.reciprocal %44#4 {approx = true} : vector<8x1xf32> -> vector<8x1xf32>
    %46 = vector.broadcast %45 : vector<8x1xf32> to vector<8x8xf32>
    %47 = arith.mulf %44#8, %46 : vector<8x8xf32>
    %48 = arith.truncf %47 : vector<8x8xf32> to vector<8x8xbf16>
    %49 = tpu.reciprocal %44#5 {approx = true} : vector<8x1xf32> -> vector<8x1xf32>
    %50 = vector.broadcast %49 : vector<8x1xf32> to vector<8x8xf32>
    %51 = arith.mulf %44#9, %50 : vector<8x8xf32>
    %52 = arith.truncf %51 : vector<8x8xf32> to vector<8x8xbf16>
    %53 = tpu.reciprocal %44#6 {approx = true} : vector<8x1xf32> -> vector<8x1xf32>
    %54 = vector.broadcast %53 : vector<8x1xf32> to vector<8x8xf32>
    %55 = arith.mulf %44#10, %54 : vector<8x8xf32>
    %56 = arith.truncf %55 : vector<8x8xf32> to vector<8x8xbf16>
    %57 = tpu.reciprocal %44#7 {approx = true} : vector<8x1xf32> -> vector<8x1xf32>
    %58 = vector.broadcast %57 : vector<8x1xf32> to vector<8x8xf32>
    %59 = arith.mulf %44#11, %58 : vector<8x8xf32>
    %60 = arith.truncf %59 : vector<8x8xf32> to vector<8x8xbf16>
    %61 = tpu.concatenate %48, %52, %56, %60 in 1 : vector<8x8xbf16>, vector<8x8xbf16>, vector<8x8xbf16>, vector<8x8xbf16> -> vector<8x32xbf16>
    %c0_28 = arith.constant 0 : index
    %c0_29 = arith.constant 0 : index
    %62 = vector.load %arg7[%c0_28, %c0_29] : memref<32x32xbf16, #tpu.memory_space<vmem>>, vector<32x32xbf16>
    %cst_30 = arith.constant dense<0.000000e+00> : vector<8x32xf32>
    %63 = tpu.matmul %61, %62, %cst_30 {dimension_numbers = #tpu.dot_dimension_numbers<[1], [0], [0], [1], [0, 0, 1, 1], [], []>} : vector<8x32xbf16>, vector<32x32xbf16>, vector<8x32xf32> -> vector<8x32xf32>
    %c0_31 = arith.constant 0 : index
    %c0_32 = arith.constant 0 : index
    %64 = vector.load %arg8[%c0_31, %c0_32] : memref<1x32xf32, #tpu.memory_space<vmem>>, vector<1x32xf32>
    %65 = vector.broadcast %64 : vector<1x32xf32> to vector<8x32xf32>
    %66 = arith.addf %63, %65 : vector<8x32xf32>
    %c0_33 = arith.constant 0 : index
    %c0_34 = arith.constant 0 : index
    %c0_35 = arith.constant 0 : index
    %67 = vector.load %arg9[%c0_33, %c0_34, %c0_35] : memref<1x8x32xf32, #tpu.memory_space<vmem>>, vector<1x8x32xf32>
    %68 = vector.shape_cast %67 : vector<1x8x32xf32> to vector<8x32xf32>
    %69 = vector.shape_cast %66 : vector<8x32xf32> to vector<1x8x32xf32>
    tpu.vector_store %arg9[%c0_33, %c0_34, %c0_35], %69 {strides = array<i32>} : memref<1x8x32xf32, #tpu.memory_space<vmem>>, vector<1x8x32xf32>,
    return
  }
  func.func @transform_0(%arg0: i32, %arg1: i32) -> (i32, i32, i32) {
    %c0_i32 = arith.constant 0 : i32
    %c0_i32_0 = arith.constant 0 : i32
    return %arg0, %arg1, %c0_i32 : i32, i32, i32
  }
  func.func @transform_1(%arg0: i32, %arg1: i32) -> (i32, i32) {
    %c0_i32 = arith.constant 0 : i32
    %c0_i32_0 = arith.constant 0 : i32
    %c0_i32_1 = arith.constant 0 : i32
    return %c0_i32, %c0_i32_0 : i32, i32
  }
  func.func @transform_2(%arg0: i32, %arg1: i32) -> (i32, i32) {
    %c0_i32 = arith.constant 0 : i32
    %c0_i32_0 = arith.constant 0 : i32
    %c0_i32_1 = arith.constant 0 : i32
    return %c0_i32, %c0_i32_0 : i32, i32
  }
  func.func @transform_3(%arg0: i32, %arg1: i32) -> (i32, i32) {
    %c0_i32 = arith.constant 0 : i32
    %c0_i32_0 = arith.constant 0 : i32
    %c0_i32_1 = arith.constant 0 : i32
    return %c0_i32, %c0_i32_0 : i32, i32
  }
  func.func @transform_4(%arg0: i32, %arg1: i32) -> (i32, i32) {
    %c0_i32 = arith.constant 0 : i32
    %c0_i32_0 = arith.constant 0 : i32
    %c0_i32_1 = arith.constant 0 : i32
    return %c0_i32, %c0_i32_0 : i32, i32
  }
  func.func @transform_5(%arg0: i32, %arg1: i32) -> (i32, i32) {
    %c0_i32 = arith.constant 0 : i32
    %c0_i32_0 = arith.constant 0 : i32
    %c0_i32_1 = arith.constant 0 : i32
    return %c0_i32, %c0_i32_0 : i32, i32
  }
  func.func @transform_6(%arg0: i32, %arg1: i32) -> (i32, i32) {
    %c0_i32 = arith.constant 0 : i32
    %c0_i32_0 = arith.constant 0 : i32
    %c0_i32_1 = arith.constant 0 : i32
    return %c0_i32, %c0_i32_0 : i32, i32
  }
  func.func @transform_7(%arg0: i32, %arg1: i32) -> (i32, i32, i32) {
    %c0_i32 = arith.constant 0 : i32
    %c0_i32_0 = arith.constant 0 : i32
    return %arg0, %arg1, %c0_i32 : i32, i32, i32
  }
}

module attributes {stable_mosaic.version = 11 : i64} {
  func.func @_mha_kernel(%arg0: i32, %arg1: i32, %arg2: memref<1x8x32xbf16, #tpu.memory_space<vmem>>, %arg3: memref<32x32xbf16, #tpu.memory_space<vmem>>, %arg4: memref<1x32xf32, #tpu.memory_space<vmem>>, %arg5: memref<32x64xbf16, #tpu.memory_space<vmem>>, %arg6: memref<1x64xf32, #tpu.memory_space<vmem>>, %arg7: memref<32x32xbf16, #tpu.memory_space<vmem>>, %arg8: memref<1x32xf32, #tpu.memory_space<vmem>>, %arg9: memref<1x8x32xf32, #tpu.memory_space<vmem>>, %arg10: memref<1x8x64xbf16, #tpu.memory_space<vmem>>) attributes {dimension_semantics = [#tpu.dimension_semantics<parallel>, #tpu.dimension_semantics<arbitrary>], iteration_bounds = array<i64: 2, 1>, scalar_prefetch = 0 : i64, scratch_operands = 1 : i64, tpu.core_type = #tpu.core_type<tc>, window_params = [{transform_indices = @transform_0, window_bounds = array<i64: 1, 8, 32>}, {pipeline_mode = #tpu.pipeline_mode<synchronous>, transform_indices = @transform_1, window_bounds = array<i64: 32, 32>}, {pipeline_mode = #tpu.pipeline_mode<synchronous>, transform_indices = @transform_2, window_bounds = array<i64: 1, 32>}, {pipeline_mode = #tpu.pipeline_mode<synchronous>, transform_indices = @transform_3, window_bounds = array<i64: 32, 64>}, {pipeline_mode = #tpu.pipeline_mode<synchronous>, transform_indices = @transform_4, window_bounds = array<i64: 1, 64>}, {pipeline_mode = #tpu.pipeline_mode<synchronous>, transform_indices = @transform_5, window_bounds = array<i64: 32, 32>}, {pipeline_mode = #tpu.pipeline_mode<synchronous>, transform_indices = @transform_6, window_bounds = array<i64: 1, 32>}, {transform_indices = @transform_7, window_bounds = array<i64: 1, 8, 32>}]} {
    %c0 = arith.constant 0 : index
    %c0_0 = arith.constant 0 : index
    %c0_1 = arith.constant 0 : index
    %0 = vector.load %arg2[%c0, %c0_0, %c0_1] : memref<1x8x32xbf16, #tpu.memory_space<vmem>>, vector<1x8x32xbf16>
    %1 = vector.shape_cast %0 : vector<1x8x32xbf16> to vector<8x32xbf16>
    %c0_2 = arith.constant 0 : index
    %c0_3 = arith.constant 0 : index
    %2 = vector.load %arg5[%c0_2, %c0_3] : memref<32x64xbf16, #tpu.memory_space<vmem>>, vector<32x64xbf16>
    %cst = arith.constant dense<0.000000e+00> : vector<8x64xf32>
    %3 = tpu.matmul %1, %2, %cst {dimension_numbers = #tpu.dot_dimension_numbers<[1], [0], [0], [1], [0, 0, 1, 1], [], []>} : vector<8x32xbf16>, vector<32x64xbf16>, vector<8x64xf32> -> vector<8x64xf32>
    %c0_4 = arith.constant 0 : index
    %c0_5 = arith.constant 0 : index
    %4 = vector.load %arg6[%c0_4, %c0_5] : memref<1x64xf32, #tpu.memory_space<vmem>>, vector<1x64xf32>
    %5 = vector.broadcast %4 : vector<1x64xf32> to vector<8x64xf32>
    %6 = arith.addf %3, %5 : vector<8x64xf32>
    %7 = arith.truncf %6 : vector<8x64xf32> to vector<8x64xbf16>
    %8 = arith.index_cast %arg1 : i32 to index
    %c0_6 = arith.constant 0 : index
    %c0_7 = arith.constant 0 : index
    %9 = vector.load %arg10[%8, %c0_6, %c0_7] : memref<1x8x64xbf16, #tpu.memory_space<vmem>>, vector<1x8x64xbf16>
    %10 = vector.shape_cast %9 : vector<1x8x64xbf16> to vector<8x64xbf16>
    %11 = vector.shape_cast %7 : vector<8x64xbf16> to vector<1x8x64xbf16>
    tpu.vector_store %arg10[%8, %c0_6, %c0_7], %11 {strides = array<i32>} : memref<1x8x64xbf16, #tpu.memory_space<vmem>>, vector<1x8x64xbf16>,
    %c0_8 = arith.constant 0 : index
    %c0_9 = arith.constant 0 : index
    %12 = vector.load %arg3[%c0_8, %c0_9] : memref<32x32xbf16, #tpu.memory_space<vmem>>, vector<32x32xbf16>
    %cst_10 = arith.constant dense<0.000000e+00> : vector<8x32xf32>
    %13 = tpu.matmul %1, %12, %cst_10 {dimension_numbers = #tpu.dot_dimension_numbers<[1], [0], [0], [1], [0, 0, 1, 1], [], []>} : vector<8x32xbf16>, vector<32x32xbf16>, vector<8x32xf32> -> vector<8x32xf32>
    %c0_11 = arith.constant 0 : index
    %c0_12 = arith.constant 0 : index
    %14 = vector.load %arg4[%c0_11, %c0_12] : memref<1x32xf32, #tpu.memory_space<vmem>>, vector<1x32xf32>
    %15 = vector.broadcast %14 : vector<1x32xf32> to vector<8x32xf32>
    %16 = arith.addf %13, %15 : vector<8x32xf32>
    %cst_13 = arith.constant 0.353553385 : f32
    %17 = vector.broadcast %cst_13 : f32 to vector<8x32xf32>
    %18 = arith.mulf %16, %17 : vector<8x32xf32>
    %19 = arith.truncf %18 : vector<8x32xf32> to vector<8x32xbf16>
    %20 = vector.extract_strided_slice %19 {offsets = [0, 0], sizes = [8, 8], strides = [1, 1]} : vector<8x32xbf16> to vector<8x8xbf16>
    %21 = vector.extract_strided_slice %19 {offsets = [0, 8], sizes = [8, 8], strides = [1, 1]} : vector<8x32xbf16> to vector<8x8xbf16>
    %22 = vector.extract_strided_slice %19 {offsets = [0, 16], sizes = [8, 8], strides = [1, 1]} : vector<8x32xbf16> to vector<8x8xbf16>
    %23 = vector.extract_strided_slice %19 {offsets = [0, 24], sizes = [8, 8], strides = [1, 1]} : vector<8x32xbf16> to vector<8x8xbf16>
    %24 = tpu.iota {dimensions = array<i32: 0>} : vector<8x8xi32>
    %c8_i32 = arith.constant 8 : i32
    %25 = arith.muli %arg1, %c8_i32 : i32
    %26 = vector.broadcast %25 : i32 to vector<8x8xi32>
    %27 = arith.addi %24, %26 : vector<8x8xi32>
    %28 = tpu.iota {dimensions = array<i32: 1>} : vector<8x8xi32>
    %cst_14 = arith.constant 0xFF800000 : f32
    %29 = vector.broadcast %cst_14 : f32 to vector<8x1xf32>
    %cst_15 = arith.constant 0xFF800000 : f32
    %30 = vector.broadcast %cst_15 : f32 to vector<8x1xf32>
    %cst_16 = arith.constant 0xFF800000 : f32
    %31 = vector.broadcast %cst_16 : f32 to vector<8x1xf32>
    %cst_17 = arith.constant 0xFF800000 : f32
    %32 = vector.broadcast %cst_17 : f32 to vector<8x1xf32>
    %cst_18 = arith.constant 0.000000e+00 : f32
    %33 = vector.broadcast %cst_18 : f32 to vector<8x1xf32>
    %cst_19 = arith.constant 0.000000e+00 : f32
    %34 = vector.broadcast %cst_19 : f32 to vector<8x1xf32>
    %cst_20 = arith.constant 0.000000e+00 : f32
    %35 = vector.broadcast %cst_20 : f32 to vector<8x1xf32>
    %cst_21 = arith.constant 0.000000e+00 : f32
    %36 = vector.broadcast %cst_21 : f32 to vector<8x1xf32>
    %cst_22 = arith.constant 0.000000e+00 : f32
    %37 = vector.broadcast %cst_22 : f32 to vector<8x8xf32>
    %cst_23 = arith.constant 0.000000e+00 : f32
    %38 = vector.broadcast %cst_23 : f32 to vector<8x8xf32>
    %cst_24 = arith.constant 0.000000e+00 : f32
    %39 = vector.broadcast %cst_24 : f32 to vector<8x8xf32>
    %cst_25 = arith.constant 0.000000e+00 : f32
    %40 = vector.broadcast %cst_25 : f32 to vector<8x8xf32>
    %c1_i32 = arith.constant 1 : i32
    %41 = arith.addi %arg1, %c1_i32 : i32
    %cst_26 = arith.constant 0xFF800000 : f32
    %c0_i32 = arith.constant 0 : i32
    %42 = arith.subi %41, %c0_i32 : i32
    %43 = arith.addi %c0_i32, %42 : i32
    %c1_i32_27 = arith.constant 1 : i32
    %44:12 = scf.for %arg11 = %c0_i32 to %43 step %c1_i32_27 iter_args(%arg12 = %29, %arg13 = %30, %arg14 = %31, %arg15 = %32, %arg16 = %33, %arg17 = %34, %arg18 = %35, %arg19 = %36, %arg20 = %37, %arg21 = %38, %arg22 = %39, %arg23 = %40) -> (vector<8x1xf32>, vector<8x1xf32>, vector<8x1xf32>, vector<8x1xf32>, vector<8x1xf32>, vector<8x1xf32>, vector<8x1xf32>, vector<8x1xf32>, vector<8x8xf32>, vector<8x8xf32>, vector<8x8xf32>, vector<8x8xf32>)  : i32 {
      %70 = arith.index_cast %arg11 : i32 to index
      %c0_36 = arith.constant 0 : index
      %c0_37 = arith.constant 0 : index
      %71 = vector.load %arg10[%70, %c0_36, %c0_37] : memref<1x8x64xbf16, #tpu.memory_space<vmem>>, vector<1x8x64xbf16>
      %72 = vector.shape_cast %71 : vector<1x8x64xbf16> to vector<8x64xbf16>
      %c8_i32_38 = arith.constant 8 : i32
      %73 = arith.muli %arg11, %c8_i32_38 : i32
      %74 = vector.broadcast %73 : i32 to vector<8x8xi32>
      %75 = arith.addi %28, %74 : vector<8x8xi32>
      %76 = arith.cmpi sle, %75, %27 : vector<8x8xi32>
      %77 = vector.extract_strided_slice %72 {offsets = [0, 0], sizes = [8, 8], strides = [1, 1]} : vector<8x64xbf16> to vector<8x8xbf16>
      %78 = vector.extract_strided_slice %72 {offsets = [0, 32], sizes = [8, 8], strides = [1, 1]} : vector<8x64xbf16> to vector<8x8xbf16>
      %cst_39 = arith.constant dense<0.000000e+00> : vector<8x8xf32>
      %79 = tpu.matmul %20, %77, %cst_39 {dimension_numbers = #tpu.dot_dimension_numbers<[1], [1], [0], [0], [0, 0, 1, 0], [], []>} : vector<8x8xbf16>, vector<8x8xbf16>, vector<8x8xf32> -> vector<8x8xf32>
      %80 = vector.broadcast %cst_26 : f32 to vector<8x8xf32>
      %81 = arith.select %76, %79, %80 : vector<8x8xi1>, vector<8x8xf32>
      %cst_40 = arith.constant dense<0xFF800000> : vector<8xf32>
      %82 = vector.multi_reduction <maximumf>, %81, %cst_40 [1] : vector<8x8xf32> to vector<8xf32>
      %83 = vector.shape_cast %82 : vector<8xf32> to vector<8x1xf32>
      %84 = arith.maximumf %arg12, %83 : vector<8x1xf32>
      %85 = arith.subf %arg12, %84 : vector<8x1xf32>
      %86 = math.exp %85 : vector<8x1xf32>
      %87 = vector.broadcast %84 : vector<8x1xf32> to vector<8x8xf32>
      %88 = arith.subf %81, %87 : vector<8x8xf32>
      %89 = math.exp %88 : vector<8x8xf32>
      %90 = arith.mulf %86, %arg16 : vector<8x1xf32>
      %cst_41 = arith.constant dense<0.000000e+00> : vector<8xf32>
      %91 = vector.multi_reduction <add>, %89, %cst_41 [1] : vector<8x8xf32> to vector<8xf32>
      %92 = vector.shape_cast %91 : vector<8xf32> to vector<8x1xf32>
      %93 = arith.addf %90, %92 : vector<8x1xf32>
      %94 = vector.broadcast %86 : vector<8x1xf32> to vector<8x8xf32>
      %95 = arith.mulf %94, %arg20 : vector<8x8xf32>
      %96 = arith.truncf %89 : vector<8x8xf32> to vector<8x8xbf16>
      %cst_42 = arith.constant dense<0.000000e+00> : vector<8x8xf32>
      %97 = tpu.matmul %96, %78, %cst_42 {dimension_numbers = #tpu.dot_dimension_numbers<[1], [0], [0], [1], [0, 0, 1, 1], [], []>} : vector<8x8xbf16>, vector<8x8xbf16>, vector<8x8xf32> -> vector<8x8xf32>
      %98 = arith.addf %95, %97 : vector<8x8xf32>
      %99 = vector.extract_strided_slice %72 {offsets = [0, 8], sizes = [8, 8], strides = [1, 1]} : vector<8x64xbf16> to vector<8x8xbf16>
      %100 = vector.extract_strided_slice %72 {offsets = [0, 40], sizes = [8, 8], strides = [1, 1]} : vector<8x64xbf16> to vector<8x8xbf16>
      %cst_43 = arith.constant dense<0.000000e+00> : vector<8x8xf32>
      %101 = tpu.matmul %21, %99, %cst_43 {dimension_numbers = #tpu.dot_dimension_numbers<[1], [1], [0], [0], [0, 0, 1, 0], [], []>} : vector<8x8xbf16>, vector<8x8xbf16>, vector<8x8xf32> -> vector<8x8xf32>
      %102 = vector.broadcast %cst_26 : f32 to vector<8x8xf32>
      %103 = arith.select %76, %101, %102 : vector<8x8xi1>, vector<8x8xf32>
      %cst_44 = arith.constant dense<0xFF800000> : vector<8xf32>
      %104 = vector.multi_reduction <maximumf>, %103, %cst_44 [1] : vector<8x8xf32> to vector<8xf32>
      %105 = vector.shape_cast %104 : vector<8xf32> to vector<8x1xf32>
      %106 = arith.maximumf %arg13, %105 : vector<8x1xf32>
      %107 = arith.subf %arg13, %106 : vector<8x1xf32>
      %108 = math.exp %107 : vector<8x1xf32>
      %109 = vector.broadcast %106 : vector<8x1xf32> to vector<8x8xf32>
      %110 = arith.subf %103, %109 : vector<8x8xf32>
      %111 = math.exp %110 : vector<8x8xf32>
      %112 = arith.mulf %108, %arg17 : vector<8x1xf32>
      %cst_45 = arith.constant dense<0.000000e+00> : vector<8xf32>
      %113 = vector.multi_reduction <add>, %111, %cst_45 [1] : vector<8x8xf32> to vector<8xf32>
      %114 = vector.shape_cast %113 : vector<8xf32> to vector<8x1xf32>
      %115 = arith.addf %112, %114 : vector<8x1xf32>
      %116 = vector.broadcast %108 : vector<8x1xf32> to vector<8x8xf32>
      %117 = arith.mulf %116, %arg21 : vector<8x8xf32>
      %118 = arith.truncf %111 : vector<8x8xf32> to vector<8x8xbf16>
      %cst_46 = arith.constant dense<0.000000e+00> : vector<8x8xf32>
      %119 = tpu.matmul %118, %100, %cst_46 {dimension_numbers = #tpu.dot_dimension_numbers<[1], [0], [0], [1], [0, 0, 1, 1], [], []>} : vector<8x8xbf16>, vector<8x8xbf16>, vector<8x8xf32> -> vector<8x8xf32>
      %120 = arith.addf %117, %119 : vector<8x8xf32>
      %121 = vector.extract_strided_slice %72 {offsets = [0, 16], sizes = [8, 8], strides = [1, 1]} : vector<8x64xbf16> to vector<8x8xbf16>
      %122 = vector.extract_strided_slice %72 {offsets = [0, 48], sizes = [8, 8], strides = [1, 1]} : vector<8x64xbf16> to vector<8x8xbf16>
      %cst_47 = arith.constant dense<0.000000e+00> : vector<8x8xf32>
      %123 = tpu.matmul %22, %121, %cst_47 {dimension_numbers = #tpu.dot_dimension_numbers<[1], [1], [0], [0], [0, 0, 1, 0], [], []>} : vector<8x8xbf16>, vector<8x8xbf16>, vector<8x8xf32> -> vector<8x8xf32>
      %124 = vector.broadcast %cst_26 : f32 to vector<8x8xf32>
      %125 = arith.select %76, %123, %124 : vector<8x8xi1>, vector<8x8xf32>
      %cst_48 = arith.constant dense<0xFF800000> : vector<8xf32>
      %126 = vector.multi_reduction <maximumf>, %125, %cst_48 [1] : vector<8x8xf32> to vector<8xf32>
      %127 = vector.shape_cast %126 : vector<8xf32> to vector<8x1xf32>
      %128 = arith.maximumf %arg14, %127 : vector<8x1xf32>
      %129 = arith.subf %arg14, %128 : vector<8x1xf32>
      %130 = math.exp %129 : vector<8x1xf32>
      %131 = vector.broadcast %128 : vector<8x1xf32> to vector<8x8xf32>
      %132 = arith.subf %125, %131 : vector<8x8xf32>
      %133 = math.exp %132 : vector<8x8xf32>
      %134 = arith.mulf %130, %arg18 : vector<8x1xf32>
      %cst_49 = arith.constant dense<0.000000e+00> : vector<8xf32>
      %135 = vector.multi_reduction <add>, %133, %cst_49 [1] : vector<8x8xf32> to vector<8xf32>
      %136 = vector.shape_cast %135 : vector<8xf32> to vector<8x1xf32>
      %137 = arith.addf %134, %136 : vector<8x1xf32>
      %138 = vector.broadcast %130 : vector<8x1xf32> to vector<8x8xf32>
      %139 = arith.mulf %138, %arg22 : vector<8x8xf32>
      %140 = arith.truncf %133 : vector<8x8xf32> to vector<8x8xbf16>
      %cst_50 = arith.constant dense<0.000000e+00> : vector<8x8xf32>
      %141 = tpu.matmul %140, %122, %cst_50 {dimension_numbers = #tpu.dot_dimension_numbers<[1], [0], [0], [1], [0, 0, 1, 1], [], []>} : vector<8x8xbf16>, vector<8x8xbf16>, vector<8x8xf32> -> vector<8x8xf32>
      %142 = arith.addf %139, %141 : vector<8x8xf32>
      %143 = vector.extract_strided_slice %72 {offsets = [0, 24], sizes = [8, 8], strides = [1, 1]} : vector<8x64xbf16> to vector<8x8xbf16>
      %144 = vector.extract_strided_slice %72 {offsets = [0, 56], sizes = [8, 8], strides = [1, 1]} : vector<8x64xbf16> to vector<8x8xbf16>
      %cst_51 = arith.constant dense<0.000000e+00> : vector<8x8xf32>
      %145 = tpu.matmul %23, %143, %cst_51 {dimension_numbers = #tpu.dot_dimension_numbers<[1], [1], [0], [0], [0, 0, 1, 0], [], []>} : vector<8x8xbf16>, vector<8x8xbf16>, vector<8x8xf32> -> vector<8x8xf32>
      %146 = vector.broadcast %cst_26 : f32 to vector<8x8xf32>
      %147 = arith.select %76, %145, %146 : vector<8x8xi1>, vector<8x8xf32>
      %cst_52 = arith.constant dense<0xFF800000> : vector<8xf32>
      %148 = vector.multi_reduction <maximumf>, %147, %cst_52 [1] : vector<8x8xf32> to vector<8xf32>
      %149 = vector.shape_cast %148 : vector<8xf32> to vector<8x1xf32>
      %150 = arith.maximumf %arg15, %149 : vector<8x1xf32>
      %151 = arith.subf %arg15, %150 : vector<8x1xf32>
      %152 = math.exp %151 : vector<8x1xf32>
      %153 = vector.broadcast %150 : vector<8x1xf32> to vector<8x8xf32>
      %154 = arith.subf %147, %153 : vector<8x8xf32>
      %155 = math.exp %154 : vector<8x8xf32>
      %156 = arith.mulf %152, %arg19 : vector<8x1xf32>
      %cst_53 = arith.constant dense<0.000000e+00> : vector<8xf32>
      %157 = vector.multi_reduction <add>, %155, %cst_53 [1] : vector<8x8xf32> to vector<8xf32>
      %158 = vector.shape_cast %157 : vector<8xf32> to vector<8x1xf32>
      %159 = arith.addf %156, %158 : vector<8x1xf32>
      %160 = vector.broadcast %152 : vector<8x1xf32> to vector<8x8xf32>
      %161 = arith.mulf %160, %arg23 : vector<8x8xf32>
      %162 = arith.truncf %155 : vector<8x8xf32> to vector<8x8xbf16>
      %cst_54 = arith.constant dense<0.000000e+00> : vector<8x8xf32>
      %163 = tpu.matmul %162, %144, %cst_54 {dimension_numbers = #tpu.dot_dimension_numbers<[1], [0], [0], [1], [0, 0, 1, 1], [], []>} : vector<8x8xbf16>, vector<8x8xbf16>, vector<8x8xf32> -> vector<8x8xf32>
      %164 = arith.addf %161, %163 : vector<8x8xf32>
      scf.yield %84, %106, %128, %150, %93, %115, %137, %159, %98, %120, %142, %164 : vector<8x1xf32>, vector<8x1xf32>, vector<8x1xf32>, vector<8x1xf32>, vector<8x1xf32>, vector<8x1xf32>, vector<8x1xf32>, vector<8x1xf32>, vector<8x8xf32>, vector<8x8xf32>, vector<8x8xf32>, vector<8x8xf32>
    }
    %45 = tpu.reciprocal %44#4 {approx = true} : vector<8x1xf32> -> vector<8x1xf32>
    %46 = vector.broadcast %45 : vector<8x1xf32> to vector<8x8xf32>
    %47 = arith.mulf %44#8, %46 : vector<8x8xf32>
    %48 = arith.truncf %47 : vector<8x8xf32> to vector<8x8xbf16>
    %49 = tpu.reciprocal %44#5 {approx = true} : vector<8x1xf32> -> vector<8x1xf32>
    %50 = vector.broadcast %49 : vector<8x1xf32> to vector<8x8xf32>
    %51 = arith.mulf %44#9, %50 : vector<8x8xf32>
    %52 = arith.truncf %51 : vector<8x8xf32> to vector<8x8xbf16>
    %53 = tpu.reciprocal %44#6 {approx = true} : vector<8x1xf32> -> vector<8x1xf32>
    %54 = vector.broadcast %53 : vector<8x1xf32> to vector<8x8xf32>
    %55 = arith.mulf %44#10, %54 : vector<8x8xf32>
    %56 = arith.truncf %55 : vector<8x8xf32> to vector<8x8xbf16>
    %57 = tpu.reciprocal %44#7 {approx = true} : vector<8x1xf32> -> vector<8x1xf32>
    %58 = vector.broadcast %57 : vector<8x1xf32> to vector<8x8xf32>
    %59 = arith.mulf %44#11, %58 : vector<8x8xf32>
    %60 = arith.truncf %59 : vector<8x8xf32> to vector<8x8xbf16>
    %61 = tpu.concatenate %48, %52, %56, %60 in 1 : vector<8x8xbf16>, vector<8x8xbf16>, vector<8x8xbf16>, vector<8x8xbf16> -> vector<8x32xbf16>
    %c0_28 = arith.constant 0 : index
    %c0_29 = arith.constant 0 : index
    %62 = vector.load %arg7[%c0_28, %c0_29] : memref<32x32xbf16, #tpu.memory_space<vmem>>, vector<32x32xbf16>
    %cst_30 = arith.constant dense<0.000000e+00> : vector<8x32xf32>
    %63 = tpu.matmul %61, %62, %cst_30 {dimension_numbers = #tpu.dot_dimension_numbers<[1], [0], [0], [1], [0, 0, 1, 1], [], []>} : vector<8x32xbf16>, vector<32x32xbf16>, vector<8x32xf32> -> vector<8x32xf32>
    %c0_31 = arith.constant 0 : index
    %c0_32 = arith.constant 0 : index
    %64 = vector.load %arg8[%c0_31, %c0_32] : memref<1x32xf32, #tpu.memory_space<vmem>>, vector<1x32xf32>
    %65 = vector.broadcast %64 : vector<1x32xf32> to vector<8x32xf32>
    %66 = arith.addf %63, %65 : vector<8x32xf32>
    %c0_33 = arith.constant 0 : index
    %c0_34 = arith.constant 0 : index
    %c0_35 = arith.constant 0 : index
    %67 = vector.load %arg9[%c0_33, %c0_34, %c0_35] : memref<1x8x32xf32, #tpu.memory_space<vmem>>, vector<1x8x32xf32>
    %68 = vector.shape_cast %67 : vector<1x8x32xf32> to vector<8x32xf32>
    %69 = vector.shape_cast %66 : vector<8x32xf32> to vector<1x8x32xf32>
    tpu.vector_store %arg9[%c0_33, %c0_34, %c0_35], %69 {strides = array<i32>} : memref<1x8x32xf32, #tpu.memory_space<vmem>>, vector<1x8x32xf32>,
    return
  }
  func.func @transform_0(%arg0: i32, %arg1: i32) -> (i32, i32, i32) {
    %c0_i32 = arith.constant 0 : i32
    %c0_i32_0 = arith.constant 0 : i32
    return %arg0, %arg1, %c0_i32 : i32, i32, i32
  }
  func.func @transform_1(%arg0: i32, %arg1: i32) -> (i32, i32) {
    %c0_i32 = arith.constant 0 : i32
    %c0_i32_0 = arith.constant 0 : i32
    %c0_i32_1 = arith.constant 0 : i32
    return %c0_i32, %c0_i32_0 : i32, i32
  }
  func.func @transform_2(%arg0: i32, %arg1: i32) -> (i32, i32) {
    %c0_i32 = arith.constant 0 : i32
    %c0_i32_0 = arith.constant 0 : i32
    %c0_i32_1 = arith.constant 0 : i32
    return %c0_i32, %c0_i32_0 : i32, i32
  }
  func.func @transform_3(%arg0: i32, %arg1: i32) -> (i32, i32) {
    %c0_i32 = arith.constant 0 : i32
    %c0_i32_0 = arith.constant 0 : i32
    %c0_i32_1 = arith.constant 0 : i32
    return %c0_i32, %c0_i32_0 : i32, i32
  }
  func.func @transform_4(%arg0: i32, %arg1: i32) -> (i32, i32) {
    %c0_i32 = arith.constant 0 : i32
    %c0_i32_0 = arith.constant 0 : i32
    %c0_i32_1 = arith.constant 0 : i32
    return %c0_i32, %c0_i32_0 : i32, i32
  }
  func.func @transform_5(%arg0: i32, %arg1: i32) -> (i32, i32) {
    %c0_i32 = arith.constant 0 : i32
    %c0_i32_0 = arith.constant 0 : i32
    %c0_i32_1 = arith.constant 0 : i32
    return %c0_i32, %c0_i32_0 : i32, i32
  }
  func.func @transform_6(%arg0: i32, %arg1: i32) -> (i32, i32) {
    %c0_i32 = arith.constant 0 : i32
    %c0_i32_0 = arith.constant 0 : i32
    %c0_i32_1 = arith.constant 0 : i32
    return %c0_i32, %c0_i32_0 : i32, i32
  }
  func.func @transform_7(%arg0: i32, %arg1: i32) -> (i32, i32, i32) {
    %c0_i32 = arith.constant 0 : i32
    %c0_i32_0 = arith.constant 0 : i32
    return %arg0, %arg1, %c0_i32 : i32, i32, i32
  }
}

</mosaic_0001>

<llo_original>
// kernel: tpu_custom_call.1
$region0: #{tpu_custom_call.1}
  #allocation0 [shape = 'u32[]', space=smem, size = 0x4, offset = 0x4, fixed_abs, tag = 'smem constant byte address 0x4 - core index']
  #allocation1 [shape = 'u32[144,128]{1,0:T(1,128)}', space=vmem, size = 0x12000, scoped, tag = 'internal scratch']
  #allocation2 [shape = 'bf16[1,8,64]{2,1,0:T(8,128)(2,1)}', space=vmem, size = 0x800, scoped, tag = 'scratch operand']
  %s0 = inlined_call_operand.hbm [shape: bf16[2,8,32], index: 0, kind: input, shape index: {}]
  %s1 = inlined_call_operand.hbm [shape: bf16[32,32], index: 1, kind: input, shape index: {}]
  %s2 = inlined_call_operand.vmem [shape: f32[1,32], index: 2, kind: input, shape index: {}]
  %s3 = inlined_call_operand.hbm [shape: bf16[32,64], index: 3, kind: input, shape index: {}]
  %s4 = inlined_call_operand.vmem [shape: f32[1,64], index: 4, kind: input, shape index: {}]
  %s5 = inlined_call_operand.hbm [shape: bf16[32,32], index: 5, kind: input, shape index: {}]
  %s6 = inlined_call_operand.vmem [shape: f32[1,32], index: 6, kind: input, shape index: {}]
  %s7 = inlined_call_operand.hbm [shape: f32[2,8,32], index: 7, kind: output, shape index: {}]
  %s8 = sld [smem:[#allocation0]]
  $region84: #{tpu_custom_call.1} parent=0
    _
  %s10 = ssub.s32 1, %s8
  %s11 = scalar_select 0, %s10, %s8
  $region1: #{tpu_custom_call.1} parent=0
    #allocation3 [shape = 'u8[4096]{0}', space=vmem, size = 0x1000, scoped, tag = 'input window, operand 0']
    #allocation4 [shape = 's32[2]{0}', space=sflag, size = 0x8, scoped, tag = 'scoped memory for tpu_custom_call.1']
    #allocation5 [shape = 's32[2]{0}', space=sflag, size = 0x8, scoped, tag = 'scoped memory for tpu_custom_call.1']
    #allocation6 [shape = 'u8[8192]{0}', space=vmem, size = 0x2000, scoped, tag = 'input window, operand 1, single buffered']
    #allocation7 [shape = 's32[1]{0}', space=sflag, size = 0x4, scoped, tag = 'scoped memory for tpu_custom_call.1']
    #allocation8 [shape = 'u8[8192]{0}', space=vmem, size = 0x2000, scoped, tag = 'input window, operand 3, single buffered']
    #allocation9 [shape = 'u8[8192]{0}', space=vmem, size = 0x2000, scoped, tag = 'input window, operand 5, single buffered']
    #allocation10 [shape = 's32[1]{0}', space=sflag, size = 0x4, scoped, tag = 'scoped memory for tpu_custom_call.1']
    #allocation11 [shape = 'u8[8192]{0}', space=vmem, size = 0x2000, scoped, tag = 'output window, operand 0']
    %12 = vsyncpa [#allocation4], 0
    %s13 = scalar_lea.sflag [#allocation4], 1
    %14 = vsyncpa %s13, 0
    %15 = vsyncpa [#allocation7], 0
    %16 = vsyncpa [#allocation10], 0
    %17 = vsyncpa [#allocation5], 0
    %s18 = scalar_lea.sflag [#allocation5], 1
    %19 = vsyncpa %s18, 0
    loop: start=0, step=1, limit=4
    $region2: #{tpu_custom_call.1} parent=1 // loop_pre_header
      _
    $region3: #{tpu_custom_call.1} parent=1 // loop_header
      %s21 = sphi 0, %s25
      %p22 = scmp.ge.s32.totalorder %s21, 4
      %s28 = sphi 0, %s40
      %s29 = sphi 0, %s36
      %s30 = sphi 0, %s28
      %s31 = sphi 0, %s29
      %s32 = sphi 0, %s30
      %s33 = sphi 0, %s31
      %s45 = sphi 0, %s47
      %s48 = sphi 0, %s45
      %s49 = sphi 0, %s48
      %s65 = sphi 0, %s49
      %s69 = sphi 0, %s69
      %s71 = sphi 0, %s69
      %s72 = sphi 0, %s71
      %s86 = sphi 0, %s72
      %s90 = sphi 0, %s90
      %s92 = sphi 0, %s90
      %s93 = sphi 0, %s92
      %s107 = sphi 0, %s93
      %s111 = sphi 0, %s111
      %s113 = sphi 0, %s111
      %s114 = sphi 0, %s113
      %s128 = sphi 0, %s114
      %s132 = sphi 0, %s132
      %s134 = sphi 0, %s132
      %s135 = sphi 0, %s134
      %s149 = sphi 0, %s135
      %s153 = sphi 0, %s153
      %s155 = sphi 0, %s153
      %s156 = sphi 0, %s155
      %s170 = sphi 0, %s156
      %s174 = sphi 0, %s174
      %s176 = sphi 0, %s174
      %s177 = sphi 0, %s176
      %s191 = sphi 0, %s177
      %s199 = sphi 0, %s201
      %s202 = sphi 0, %s199
      %s203 = sphi 0, %s202
      %s219 = sphi 0, %s203
    $region4: #{tpu_custom_call.1} parent=1 // loop_header_branch
      %24 = sbr.rel (%p22) target = $region8
    $region5: #{tpu_custom_call.1} parent=1 // loop_body
      %s26 = ssub.s32 %s21, 1
      %s27 = ssub.s32 %s21, 2
      %s34 = sadd.s32 1, %s29
      %p35 = scmp.ge.s32.totalorder %s34, 1
      %s36 = scalar_select %p35, 0, %s34
      %s37 = sadd.s32 1, %s28
      %s38 = scalar_select %p35, %s37, %s28
      %p39 = scmp.ge.s32.totalorder %s38, 2
      %s40 = scalar_select %p39, 0, %s38
      %s41 = ssub.s32 %s28, %s40
      %s42 = ssub.s32 %s29, %s36
      %s43 = sor.u32 %s41, %s42
      %p44 = scmp.eq.s32.totalorder %s43, 0
      %s46 = sadd.s32 %s45, 1
      %s47 = scalar_select %p44, %s45, %s46
      %p50 = pneg %p44
      %p51 = scmp.eq.s32.totalorder %s21, 1
      %p52 = por %p50, %p51
      %p53 = scmp.ne.s32.totalorder %s45, %s48
      %p54 = scmp.eq.s32.totalorder %s21, 0
      %p55 = por %p53, %p54
      %p56 = scmp.ne.s32.totalorder %s45, %s48
      %p57 = scmp.eq.s32.totalorder %s26, 1
      %p58 = por %p56, %p57
      %p59 = scmp.ne.s32.totalorder %s48, %s49
      %p60 = scmp.eq.s32.totalorder %s26, 0
      %p61 = por %p59, %p60
      %p62 = scmp.ne.s32.totalorder %s48, %s49
      %p63 = scmp.eq.s32.totalorder %s27, 1
      %p64 = por %p62, %p63
      %p66 = scmp.ne.s32.totalorder %s49, %s65
      %p67 = scmp.eq.s32.totalorder %s27, 0
      %p68 = por %p66, %p67
      %s70 = sadd.s32 %s69, 1
      %p73 = scmp.eq.s32.totalorder %s21, 1
      %p74 = scmp.ne.s32.totalorder %s69, %s71
      %p75 = scmp.eq.s32.totalorder %s21, 0
      %p76 = por %p74, %p75
      %p77 = scmp.ne.s32.totalorder %s69, %s71
      %p78 = scmp.eq.s32.totalorder %s26, 1
      %p79 = por %p77, %p78
      %p80 = scmp.ne.s32.totalorder %s71, %s72
      %p81 = scmp.eq.s32.totalorder %s26, 0
      %p82 = por %p80, %p81
      %p83 = scmp.ne.s32.totalorder %s71, %s72
      %p84 = scmp.eq.s32.totalorder %s27, 1
      %p85 = por %p83, %p84
      %p87 = scmp.ne.s32.totalorder %s72, %s86
      %p88 = scmp.eq.s32.totalorder %s27, 0
      %p89 = por %p87, %p88
      %s91 = sadd.s32 %s90, 1
      %p94 = scmp.eq.s32.totalorder %s21, 1
      %p95 = scmp.ne.s32.totalorder %s90, %s92
      %p96 = scmp.eq.s32.totalorder %s21, 0
      %p97 = por %p95, %p96
      %p98 = scmp.ne.s32.totalorder %s90, %s92
      %p99 = scmp.eq.s32.totalorder %s26, 1
      %p100 = por %p98, %p99
      %p101 = scmp.ne.s32.totalorder %s92, %s93
      %p102 = scmp.eq.s32.totalorder %s26, 0
      %p103 = por %p101, %p102
      %p104 = scmp.ne.s32.totalorder %s92, %s93
      %p105 = scmp.eq.s32.totalorder %s27, 1
      %p106 = por %p104, %p105
      %p108 = scmp.ne.s32.totalorder %s93, %s107
      %p109 = scmp.eq.s32.totalorder %s27, 0
      %p110 = por %p108, %p109
      %s112 = sadd.s32 %s111, 1
      %p115 = scmp.eq.s32.totalorder %s21, 1
      %p116 = scmp.ne.s32.totalorder %s111, %s113
      %p117 = scmp.eq.s32.totalorder %s21, 0
      %p118 = por %p116, %p117
      %p119 = scmp.ne.s32.totalorder %s111, %s113
      %p120 = scmp.eq.s32.totalorder %s26, 1
      %p121 = por %p119, %p120
      %p122 = scmp.ne.s32.totalorder %s113, %s114
      %p123 = scmp.eq.s32.totalorder %s26, 0
      %p124 = por %p122, %p123
      %p125 = scmp.ne.s32.totalorder %s113, %s114
      %p126 = scmp.eq.s32.totalorder %s27, 1
      %p127 = por %p125, %p126
      %p129 = scmp.ne.s32.totalorder %s114, %s128
      %p130 = scmp.eq.s32.totalorder %s27, 0
      %p131 = por %p129, %p130
      %s133 = sadd.s32 %s132, 1
      %p136 = scmp.eq.s32.totalorder %s21, 1
      %p137 = scmp.ne.s32.totalorder %s132, %s134
      %p138 = scmp.eq.s32.totalorder %s21, 0
      %p139 = por %p137, %p138
      %p140 = scmp.ne.s32.totalorder %s132, %s134
      %p141 = scmp.eq.s32.totalorder %s26, 1
      %p142 = por %p140, %p141
      %p143 = scmp.ne.s32.totalorder %s134, %s135
      %p144 = scmp.eq.s32.totalorder %s26, 0
      %p145 = por %p143, %p144
      %p146 = scmp.ne.s32.totalorder %s134, %s135
      %p147 = scmp.eq.s32.totalorder %s27, 1
      %p148 = por %p146, %p147
      %p150 = scmp.ne.s32.totalorder %s135, %s149
      %p151 = scmp.eq.s32.totalorder %s27, 0
      %p152 = por %p150, %p151
      %s154 = sadd.s32 %s153, 1
      %p157 = scmp.eq.s32.totalorder %s21, 1
      %p158 = scmp.ne.s32.totalorder %s153, %s155
      %p159 = scmp.eq.s32.totalorder %s21, 0
      %p160 = por %p158, %p159
      %p161 = scmp.ne.s32.totalorder %s153, %s155
      %p162 = scmp.eq.s32.totalorder %s26, 1
      %p163 = por %p161, %p162
      %p164 = scmp.ne.s32.totalorder %s155, %s156
      %p165 = scmp.eq.s32.totalorder %s26, 0
      %p166 = por %p164, %p165
      %p167 = scmp.ne.s32.totalorder %s155, %s156
      %p168 = scmp.eq.s32.totalorder %s27, 1
      %p169 = por %p167, %p168
      %p171 = scmp.ne.s32.totalorder %s156, %s170
      %p172 = scmp.eq.s32.totalorder %s27, 0
      %p173 = por %p171, %p172
      %s175 = sadd.s32 %s174, 1
      %p178 = scmp.eq.s32.totalorder %s21, 1
      %p179 = scmp.ne.s32.totalorder %s174, %s176
      %p180 = scmp.eq.s32.totalorder %s21, 0
      %p181 = por %p179, %p180
      %p182 = scmp.ne.s32.totalorder %s174, %s176
      %p183 = scmp.eq.s32.totalorder %s26, 1
      %p184 = por %p182, %p183
      %p185 = scmp.ne.s32.totalorder %s176, %s177
      %p186 = scmp.eq.s32.totalorder %s26, 0
      %p187 = por %p185, %p186
      %p188 = scmp.ne.s32.totalorder %s176, %s177
      %p189 = scmp.eq.s32.totalorder %s27, 1
      %p190 = por %p188, %p189
      %p192 = scmp.ne.s32.totalorder %s177, %s191
      %p193 = scmp.eq.s32.totalorder %s27, 0
      %p194 = por %p192, %p193
      %s195 = ssub.s32 %s28, %s40
      %s196 = ssub.s32 %s29, %s36
      %s197 = sor.u32 %s195, %s196
      %p198 = scmp.eq.s32.totalorder %s197, 0
      %s200 = sadd.s32 %s199, 1
      %s201 = scalar_select %p198, %s199, %s200
      %p204 = pneg %p198
      %p205 = scmp.eq.s32.totalorder %s21, 1
      %p206 = por %p204, %p205
      %p207 = scmp.ne.s32.totalorder %s199, %s202
      %p208 = scmp.eq.s32.totalorder %s21, 0
      %p209 = por %p207, %p208
      %p210 = scmp.ne.s32.totalorder %s199, %s202
      %p211 = scmp.eq.s32.totalorder %s26, 1
      %p212 = por %p210, %p211
      %p213 = scmp.ne.s32.totalorder %s202, %s203
      %p214 = scmp.eq.s32.totalorder %s26, 0
      %p215 = por %p213, %p214
      %p216 = scmp.ne.s32.totalorder %s202, %s203
      %p217 = scmp.eq.s32.totalorder %s27, 1
      %p218 = por %p216, %p217
      %p220 = scmp.ne.s32.totalorder %s203, %s219
      %p221 = scmp.eq.s32.totalorder %s27, 0
      %p222 = por %p220, %p221
      %p223 = scmp.le.s32.totalorder 1, %s21
      %p224 = scmp.lt.s32.totalorder %s21, 3
      %p225 = pnand %p223, %p224
      %p226 = pneg %p225
      // Predicated region
      $region9: #{tpu_custom_call.1} parent=5 // pred_check
        _
      $region10: #{tpu_custom_call.1} parent=5 // pred_check_branch
        %228 = sbr.rel (%p225) target = $region12
      $region11: #{tpu_custom_call.1} parent=5 // pred_region
        %s229 = ssub.s32 %s21, 1
        // Predicated region
        $region13: #{tpu_custom_call.1} parent=11 // pred_check
          %p230 = pneg %p82
        $region14: #{tpu_custom_call.1} parent=11 // pred_check_branch
          %232 = sbr.rel (%p230) target = $region16
        $region15: #{tpu_custom_call.1} parent=11 // pred_region
          %s234 = ssub.s32 256, 256
          %235 = vsyncadd [#allocation7], %s234
          %s236 = sshll.u32 [#allocation6], 4
          %s237 = int_to_ptr.vmem [resolvable:$true] %s236
          %242 = dma.hbm_to_vmem [thread:$0]  %s1, 256, %s237, [#allocation7], 64, 64, 4
        $region16: #{tpu_custom_call.1} parent=11 // pred_fallthru
          _
        // Predicated region
        $region17: #{tpu_custom_call.1} parent=11 // pred_check
          %p243 = pneg %p103
        $region18: #{tpu_custom_call.1} parent=11 // pred_check_branch
          %245 = sbr.rel (%p243) target = $region20
        $region19: #{tpu_custom_call.1} parent=11 // pred_region
          _
        $region20: #{tpu_custom_call.1} parent=11 // pred_fallthru
          _
        // Predicated region
        $region21: #{tpu_custom_call.1} parent=11 // pred_check
          %p246 = pneg %p124
        $region22: #{tpu_custom_call.1} parent=11 // pred_check_branch
          %248 = sbr.rel (%p246) target = $region24
        $region23: #{tpu_custom_call.1} parent=11 // pred_region
          %s250 = ssub.s32 256, 256
          %251 = vsyncadd [#allocation7], %s250
          %s252 = sshll.u32 [#allocation8], 4
          %s253 = int_to_ptr.vmem [resolvable:$true] %s252
          %258 = dma.hbm_to_vmem [thread:$0]  %s3, 256, %s253, [#allocation7], 64, 64, 4
        $region24: #{tpu_custom_call.1} parent=11 // pred_fallthru
          _
        // Predicated region
        $region25: #{tpu_custom_call.1} parent=11 // pred_check
          %p259 = pneg %p145
        $region26: #{tpu_custom_call.1} parent=11 // pred_check_branch
          %261 = sbr.rel (%p259) target = $region28
        $region27: #{tpu_custom_call.1} parent=11 // pred_region
          _
        $region28: #{tpu_custom_call.1} parent=11 // pred_fallthru
          _
        // Predicated region
        $region29: #{tpu_custom_call.1} parent=11 // pred_check
          %p262 = pneg %p166
        $region30: #{tpu_custom_call.1} parent=11 // pred_check_branch
          %264 = sbr.rel (%p262) target = $region32
        $region31: #{tpu_custom_call.1} parent=11 // pred_region
          %s266 = ssub.s32 256, 256
          %267 = vsyncadd [#allocation10], %s266
          %s268 = sshll.u32 [#allocation9], 4
          %s269 = int_to_ptr.vmem [resolvable:$true] %s268
          %274 = dma.hbm_to_vmem [thread:$0]  %s5, 256, %s269, [#allocation10], 64, 64, 4
        $region32: #{tpu_custom_call.1} parent=11 // pred_fallthru
          _
        // Predicated region
        $region33: #{tpu_custom_call.1} parent=11 // pred_check
          %p275 = pneg %p187
        $region34: #{tpu_custom_call.1} parent=11 // pred_check_branch
          %277 = sbr.rel (%p275) target = $region36
        $region35: #{tpu_custom_call.1} parent=11 // pred_region
          _
        $region36: #{tpu_custom_call.1} parent=11 // pred_fallthru
          _
      $region12: #{tpu_custom_call.1} parent=5 // pred_fallthru
        _
      %p278 = scmp.lt.s32.totalorder %s21, 2
      // Predicated region
      $region37: #{tpu_custom_call.1} parent=5 // pred_check
        %p279 = pneg %p278
      $region38: #{tpu_custom_call.1} parent=5 // pred_check_branch
        %281 = sbr.rel (%p279) target = $region40
      $region39: #{tpu_custom_call.1} parent=5 // pred_region
        // Predicated region
        $region41: #{tpu_custom_call.1} parent=39 // pred_check
          %p282 = pneg %p55
        $region42: #{tpu_custom_call.1} parent=39 // pred_check_branch
          %284 = sbr.rel (%p282) target = $region44
        $region43: #{tpu_custom_call.1} parent=39 // pred_region
          %s285 = sand.u32 %s45, 1
          %s286 = scalar_lea.sflag [#allocation4], %s285
          %s287 = sand.u32 %s45, 1
          %s288 = smul.addr %s287, 4
          %s289 = scalar_lea.vmem [#allocation3], %s288
          %s291 = ssub.s32 64, 64
          %292 = vsyncadd %s286, %s291
          %s293 = sadd.s32 %s29, %s28
          %s294 = smul.addr %s293, 64
          %s295 = scalar_lea.hbm %s0, %s294
          %s297 = sshll.u32 %s289, 4
          %s298 = int_to_ptr.vmem [resolvable:$true] %s297
          %300 = dma.hbm_to_vmem [thread:$0]  %s295, 64, %s298, %s286
        $region44: #{tpu_custom_call.1} parent=39 // pred_fallthru
          _
      $region40: #{tpu_custom_call.1} parent=5 // pred_fallthru
        _
      %p301 = scmp.le.s32.totalorder 1, %s21
      %p302 = scmp.lt.s32.totalorder %s21, 3
      %p303 = pnand %p301, %p302
      %p304 = pneg %p303
      // Predicated region
      $region45: #{tpu_custom_call.1} parent=5 // pred_check
        _
      $region46: #{tpu_custom_call.1} parent=5 // pred_check_branch
        %306 = sbr.rel (%p303) target = $region48
      $region47: #{tpu_custom_call.1} parent=5 // pred_region
        %s307 = ssub.s32 %s21, 1
        %s308 = sand.u32 %s48, 1
        %s309 = scalar_lea.sflag [#allocation4], %s308
        %s310 = sand.u32 %s48, 1
        %s311 = smul.addr %s310, 4
        %s312 = scalar_lea.vmem [#allocation3], %s311
        // Predicated region
        $region49: #{tpu_custom_call.1} parent=47 // pred_check
          %p313 = pneg %p61
        $region50: #{tpu_custom_call.1} parent=47 // pred_check_branch
          %315 = sbr.rel (%p313) target = $region52
        $region51: #{tpu_custom_call.1} parent=47 // pred_region
          %316 = dma.done %s309, 64
        $region52: #{tpu_custom_call.1} parent=47 // pred_fallthru
          _
        // Predicated region
        $region53: #{tpu_custom_call.1} parent=47 // pred_check
          %p317 = pneg %p82
        $region54: #{tpu_custom_call.1} parent=47 // pred_check_branch
          %319 = sbr.rel (%p317) target = $region56
        $region55: #{tpu_custom_call.1} parent=47 // pred_region
          %320 = dma.done [#allocation7], 256
        $region56: #{tpu_custom_call.1} parent=47 // pred_fallthru
          _
        // Predicated region
        $region57: #{tpu_custom_call.1} parent=47 // pred_check
          %p321 = pneg %p124
        $region58: #{tpu_custom_call.1} parent=47 // pred_check_branch
          %323 = sbr.rel (%p321) target = $region60
        $region59: #{tpu_custom_call.1} parent=47 // pred_region
          %324 = dma.done [#allocation7], 256
        $region60: #{tpu_custom_call.1} parent=47 // pred_fallthru
          _
        // Predicated region
        $region61: #{tpu_custom_call.1} parent=47 // pred_check
          %p325 = pneg %p166
        $region62: #{tpu_custom_call.1} parent=47 // pred_check_branch
          %327 = sbr.rel (%p325) target = $region64
        $region63: #{tpu_custom_call.1} parent=47 // pred_region
          %328 = dma.done [#allocation10], 256
        $region64: #{tpu_custom_call.1} parent=47 // pred_fallthru
          _
        %s329 = sand.u32 %s48, 1
        %s330 = scalar_lea.sflag [#allocation4], %s329
        %s331 = sand.u32 %s48, 1
        %s332 = smul.addr %s331, 4
        %s333 = scalar_lea.vmem [#allocation3], %s332
        %p334 = pneg %p61
        %p335 = pneg %p58
        %p336 = pneg %p82
        %p337 = pneg %p79
        %p338 = pneg %p103
        %p339 = pneg %p100
        %p340 = pneg %p124
        %p341 = pneg %p121
        %p342 = pneg %p145
        %p343 = pneg %p142
        %p344 = pneg %p166
        %p345 = pneg %p163
        %p346 = pneg %p187
        %p347 = pneg %p184
        %p348 = pneg %p215
        %p349 = pneg %p212
        %s350 = sand.u32 %s202, 1
        %s351 = scalar_lea.sflag [#allocation5], %s350
        %s352 = sand.u32 %s202, 1
        %s353 = smul.addr %s352, 8
        %s354 = scalar_lea.vmem [#allocation11], %s353
        %v356 = vld [vmem:[%s312] sm:$0xf]
        %v357 = vld [vmem:[#allocation8] sm:$0xf]
        %v358 = vld [vmem:[#allocation8 + $0x4] sm:$0xf]
        %v359 = vld [vmem:[#allocation8 + $0x8] sm:$0xf]
        %v360 = vld [vmem:[#allocation8 + $0xc] sm:$0xf]
        %v361 = vld [vmem:[%s4] sm:$0x1]
        %v363 = vlaneseq
        %v364 = vshrl.u32 %v363, 7
        %v365 = vsub.s32 0, %v364
        %v366 = vrot.slane %v361, %v365
        %v372 = vunpack.c.l.b16 %v357
        %v373 = vunpack.c.l.b16 %v358
        %v374 = vunpack.c.l.b16 %v359
        %v375 = vunpack.c.l.b16 %v360
        %v376 = vpack.c.b16 %v373, %v372
        %v377 = vpack.c.b16 %v375, %v374
        %vm380 = vcmask 261120
        %v382 = vsel %vm380, %v356, 0
        %384 = vmatprep.subr.bf16.mxu0 0
        %385 = vmatpush1.bf16.msra.mxu0 0
        %386 = vmatprep.subr.bf16.mxu0 0
        %387 = vmatpush1.bf16.msra.mxu0 0
        %388 = vmatprep.subr.bf16.mxu0 0
        %389 = vmatpush1.bf16.msra.mxu0 0
        %390 = vmatprep.subr.bf16.mxu0 0
        %391 = vmatpush1.bf16.msra.mxu0 0
        %392 = vmatprep.subr.bf16.mxu0 0
        %393 = vmatpush1.bf16.msra.mxu0 0
        %394 = vmatprep.subr.bf16.mxu0 0
        %395 = vmatpush1.bf16.msra.mxu0 0
        %396 = vmatprep.subr.bf16.mxu0 0
        %397 = vmatpush1.bf16.msra.mxu0 %v377
        %398 = vmatprep.subr.bf16.mxu0 0
        %399 = vmatpush1.bf16.msra.mxu0 %v376
        %400 = vmatprep.subr.bf16.mxu0 0
        %401 = vmatpush2.bf16.msra.mxu0 0
        %402 = vmatprep.subr.bf16.mxu0 0
        %403 = vmatpush2.bf16.msra.mxu0 0
        %404 = vmatprep.subr.bf16.mxu0 0
        %405 = vmatpush2.bf16.msra.mxu0 0
        %406 = vmatprep.subr.bf16.mxu0 0
        %407 = vmatpush2.bf16.msra.mxu0 0
        %408 = vmatprep.subr.bf16.mxu0 0
        %409 = vmatpush2.bf16.msra.mxu0 0
        %410 = vmatprep.subr.bf16.mxu0 0
        %411 = vmatpush2.bf16.msra.mxu0 0
        %412 = vmatprep.subr.bf16.mxu0 0
        %413 = vmatpush2.bf16.msra.mxu0 0
        %414 = vmatprep.subr.bf16.mxu0 0
        %415 = vmatpush2.bf16.msra.mxu0 0
        %416 = vmatprep.mubr.bf16.mxu0 0
        %417 = vmatmul.mubr.bf16.gmra.mxu0 %v382
        %v418 = vpop.f32.mrf.mxu0
        %v419 = vadd.f32 %v366, %v418
        %v420 = vpop.f32.mrf.mxu0
        %v421 = vpop.f32.mrf.mxu0
        %v422 = vpop.f32.mrf.mxu0
        %423 = vdwg.mxu0
        %v424 = vpack.c.bf16 %v419, %v419
        %s425 = smul.addr %s31, 4
        %s426 = scalar_lea.vmem [#allocation2], %s425
        %vm427 = vcmask 519168
        %428 = vst.msk [vmem:[%s426] sm:$0xf] %vm427, %v424
        %v429 = vld [vmem:[#allocation6] sm:$0xf]
        %v430 = vld [vmem:[#allocation6 + $0x4] sm:$0xf]
        %v431 = vld [vmem:[#allocation6 + $0x8] sm:$0xf]
        %v432 = vld [vmem:[#allocation6 + $0xc] sm:$0xf]
        %v433 = vld [vmem:[%s2] sm:$0x1]
        %v435 = vlaneseq
        %v436 = vshrl.u32 %v435, 7
        %v437 = vsub.s32 0, %v436
        %v438 = vrot.slane %v433, %v437
        %v444 = vunpack.c.l.b16 %v429
        %v445 = vunpack.c.l.b16 %v430
        %v446 = vunpack.c.l.b16 %v431
        %v447 = vunpack.c.l.b16 %v432
        %v448 = vpack.c.b16 %v445, %v444
        %v449 = vpack.c.b16 %v447, %v446
        %452 = vmatprep.subr.bf16.mxu0 0
        %453 = vmatpush1.bf16.msra.mxu0 0
        %454 = vmatprep.subr.bf16.mxu0 0
        %455 = vmatpush1.bf16.msra.mxu0 0
        %456 = vmatprep.subr.bf16.mxu0 0
        %457 = vmatpush1.bf16.msra.mxu0 0
        %458 = vmatprep.subr.bf16.mxu0 0
        %459 = vmatpush1.bf16.msra.mxu0 0
        %460 = vmatprep.subr.bf16.mxu0 0
        %461 = vmatpush1.bf16.msra.mxu0 0
        %462 = vmatprep.subr.bf16.mxu0 0
        %463 = vmatpush1.bf16.msra.mxu0 0
        %464 = vmatprep.subr.bf16.mxu0 0
        %465 = vmatpush1.bf16.msra.mxu0 %v449
        %466 = vmatprep.subr.bf16.mxu0 0
        %467 = vmatpush1.bf16.msra.mxu0 %v448
        %468 = vmatprep.subr.bf16.mxu0 0
        %469 = vmatpush2.bf16.msra.mxu0 0
        %470 = vmatprep.subr.bf16.mxu0 0
        %471 = vmatpush2.bf16.msra.mxu0 0
        %472 = vmatprep.subr.bf16.mxu0 0
        %473 = vmatpush2.bf16.msra.mxu0 0
        %474 = vmatprep.subr.bf16.mxu0 0
        %475 = vmatpush2.bf16.msra.mxu0 0
        %476 = vmatprep.subr.bf16.mxu0 0
        %477 = vmatpush2.bf16.msra.mxu0 0
        %478 = vmatprep.subr.bf16.mxu0 0
        %479 = vmatpush2.bf16.msra.mxu0 0
        %480 = vmatprep.subr.bf16.mxu0 0
        %481 = vmatpush2.bf16.msra.mxu0 0
        %482 = vmatprep.subr.bf16.mxu0 0
        %483 = vmatpush2.bf16.msra.mxu0 0
        %484 = vmatprep.mubr.bf16.mxu0 0
        %485 = vmatmul.mubr.bf16.gmra.mxu0 %v382
        %v486 = vpop.f32.mrf.mxu0
        %v487 = vadd.f32 %v438, %v486
        %v488 = vpop.f32.mrf.mxu0
        %v489 = vpop.f32.mrf.mxu0
        %v490 = vpop.f32.mrf.mxu0
        %491 = vdwg.mxu0
        %v492 = vmul.f32 %v487, 0.35355338
        %v493 = vpack.c.bf16 %v492, %v492
        %v494 = vlaneseq
        %v495 = vshrl.u32 %v494, 7
        %s496 = smul.u32 %s31, 8
        %v497 = vstv %s496
        %v498 = vadd.s32 %v495, %v497
        %v499 = vlaneseq
        %v500 = vand.u32 %v499, 127
        %s501 = sadd.s32 %s31, 1
        // While loop
        $region65: #{tpu_custom_call.1} parent=47 // loop_pre_header
          _
        $region66: #{tpu_custom_call.1} parent=47 // loop_header
          %s503 = sphi 0, %s505
          %p504 = scmp.ge.s32.totalorder %s503, %s501
          %v508 = vphi -inf, %v578
          %v509 = vphi -inf, %v700
          %v510 = vphi -inf, %v817
          %v511 = vphi -inf, %v934
          %v512 = vphi 0.0, %v589
          %v513 = vphi 0.0, %v711
          %v514 = vphi 0.0, %v828
          %v515 = vphi 0.0, %v945
          %v516 = vphi 0.0, %v644
          %v517 = vphi 0.0, %v762
          %v518 = vphi 0.0, %v879
          %v519 = vphi 0.0, %v996
        $region67: #{tpu_custom_call.1} parent=47 // loop_header_branch
          %507 = sbr.rel (%p504) target = $region71
        $region68: #{tpu_custom_call.1} parent=47 // loop_body
          %s520 = smul.addr %s503, 4
          %s521 = scalar_lea.vmem [#allocation2], %s520
          %v522 = vld [vmem:[%s521] sm:$0xf]
          %s523 = smul.u32 %s503, 8
          %v524 = vstv %s523
          %v525 = vadd.s32 %v500, %v524
          %vm526 = vcmp.le.s32.totalorder %v525, %v498
          %vm527 = vcmask 64512
          %v529 = vsel %vm527, %v493, 0
          %v532 = vsel %vm527, %v522, 0
          %534 = vmatprep.subr.bf16.mxu0 0
          %535 = vmatpush1.bf16.xpose.msra.mxu0 0
          %536 = vmatprep.subr.bf16.mxu0 0
          %537 = vmatpush1.bf16.xpose.msra.mxu0 0
          %538 = vmatprep.subr.bf16.mxu0 0
          %539 = vmatpush1.bf16.xpose.msra.mxu0 0
          %540 = vmatprep.subr.bf16.mxu0 0
          %541 = vmatpush1.bf16.xpose.msra.mxu0 0
          %542 = vmatprep.subr.bf16.mxu0 0
          %543 = vmatpush1.bf16.xpose.msra.mxu0 0
          %544 = vmatprep.subr.bf16.mxu0 0
          %545 = vmatpush1.bf16.xpose.msra.mxu0 0
          %546 = vmatprep.subr.bf16.mxu0 0
          %547 = vmatpush1.bf16.xpose.msra.mxu0 0
          %548 = vmatprep.subr.bf16.mxu0 0
          %549 = vmatpush1.bf16.xpose.msra.mxu0 %v532
          %550 = vmatprep.subr.bf16.mxu0 0
          %551 = vmatpush2.bf16.xpose.msra.mxu0 0
          %552 = vmatprep.subr.bf16.mxu0 0
          %553 = vmatpush2.bf16.xpose.msra.mxu0 0
          %554 = vmatprep.subr.bf16.mxu0 0
          %555 = vmatpush2.bf16.xpose.msra.mxu0 0
          %556 = vmatprep.subr.bf16.mxu0 0
          %557 = vmatpush2.bf16.xpose.msra.mxu0 0
          %558 = vmatprep.subr.bf16.mxu0 0
          %559 = vmatpush2.bf16.xpose.msra.mxu0 0
          %560 = vmatprep.subr.bf16.mxu0 0
          %561 = vmatpush2.bf16.xpose.msra.mxu0 0
          %562 = vmatprep.subr.bf16.mxu0 0
          %563 = vmatpush2.bf16.xpose.msra.mxu0 0
          %564 = vmatprep.subr.bf16.mxu0 0
          %565 = vmatpush2.bf16.xpose.msra.mxu0 0
          %566 = vmatprep.mubr.bf16.mxu0 0
          %567 = vmatmul.mubr.bf16.gmra.mxu0 %v529
          %v568 = vpop.f32.mrf.mxu0
          %v569 = vadd.f32 0.0, %v568
          %v570 = vpop.f32.mrf.mxu0
          %v571 = vpop.f32.mrf.mxu0
          %v572 = vpop.f32.mrf.mxu0
          %573 = vdwg.mxu0
          %v574 = vsel %vm526, %v569, -inf
          %v575 = vsel %vm527, %v574, -inf
          %576 = vmax.xlane.f32.xlu0 %v575
          %v577 = vpop.xlane.xlu0 %576
          %v578 = vmax.f32 %v508, %v577
          %v579 = vsub.f32 %v508, %v578
          %v580 = vmul.f32 %v579, 1.442695
          %v581 = vpow.pop %v580
          %v582 = vsub.f32 %v574, %v578
          %v583 = vmul.f32 %v582, 1.442695
          %v584 = vpow.pop %v583
          %v585 = vmul.f32 %v581, %v512
          %v586 = vsel %vm527, %v584, 0.0
          %587 = vadd.xlane.f32.xlu0 %v586
          %v588 = vpop.xlane.xlu0 %587
          %v589 = vadd.f32 %v585, %v588
          %v590 = vmul.f32 %v581, %v516
          %v591 = vpack.c.bf16 %v584, %v584
          %v593 = vunpack.c.l.b16 %v522
          %v594 = vpack.c.b16 %v593, %v593
          %595 = vrot.lane.b32.xlu0 %v594, 96
          %v596 = vpop.permute.xlu0 %595
          %v598 = vsel %vm527, %v591, 0
          %vm600 = vcmask 1043456
          %v602 = vsel %vm600, %v596, 0
          %604 = vmatprep.subr.bf16.mxu0 0
          %605 = vmatpush1.bf16.msra.mxu0 0
          %606 = vmatprep.subr.bf16.mxu0 0
          %607 = vmatpush1.bf16.msra.mxu0 0
          %608 = vmatprep.subr.bf16.mxu0 0
          %609 = vmatpush1.bf16.msra.mxu0 0
          %610 = vmatprep.subr.bf16.mxu0 0
          %611 = vmatpush1.bf16.msra.mxu0 0
          %612 = vmatprep.subr.bf16.mxu0 0
          %613 = vmatpush1.bf16.msra.mxu0 0
          %614 = vmatprep.subr.bf16.mxu0 0
          %615 = vmatpush1.bf16.msra.mxu0 0
          %616 = vmatprep.subr.bf16.mxu0 0
          %617 = vmatpush1.bf16.msra.mxu0 0
          %618 = vmatprep.subr.bf16.mxu0 0
          %619 = vmatpush1.bf16.msra.mxu0 %v602
          %620 = vmatprep.subr.bf16.mxu0 0
          %621 = vmatpush2.bf16.msra.mxu0 0
          %622 = vmatprep.subr.bf16.mxu0 0
          %623 = vmatpush2.bf16.msra.mxu0 0
          %624 = vmatprep.subr.bf16.mxu0 0
          %625 = vmatpush2.bf16.msra.mxu0 0
          %626 = vmatprep.subr.bf16.mxu0 0
          %627 = vmatpush2.bf16.msra.mxu0 0
          %628 = vmatprep.subr.bf16.mxu0 0
          %629 = vmatpush2.bf16.msra.mxu0 0
          %630 = vmatprep.subr.bf16.mxu0 0
          %631 = vmatpush2.bf16.msra.mxu0 0
          %632 = vmatprep.subr.bf16.mxu0 0
          %633 = vmatpush2.bf16.msra.mxu0 0
          %634 = vmatprep.subr.bf16.mxu0 0
          %635 = vmatpush2.bf16.msra.mxu0 0
          %636 = vmatprep.mubr.bf16.mxu0 0
          %637 = vmatmul.mubr.bf16.gmra.mxu0 %v598
          %v638 = vpop.f32.mrf.mxu0
          %v639 = vadd.f32 0.0, %v638
          %v640 = vpop.f32.mrf.mxu0
          %v641 = vpop.f32.mrf.mxu0
          %v642 = vpop.f32.mrf.mxu0
          %643 = vdwg.mxu0
          %v644 = vadd.f32 %v590, %v639
          %646 = vrot.lane.b32.xlu0 %v493, 120
          %v647 = vpop.permute.xlu0 %646
          %648 = vrot.lane.b32.xlu0 %v594, 120
          %v649 = vpop.permute.xlu0 %648
          %v651 = vsel %vm527, %v647, 0
          %v654 = vsel %vm527, %v649, 0
          %656 = vmatprep.subr.bf16.mxu0 0
          %657 = vmatpush1.bf16.xpose.msra.mxu0 0
          %658 = vmatprep.subr.bf16.mxu0 0
          %659 = vmatpush1.bf16.xpose.msra.mxu0 0
          %660 = vmatprep.subr.bf16.mxu0 0
          %661 = vmatpush1.bf16.xpose.msra.mxu0 0
          %662 = vmatprep.subr.bf16.mxu0 0
          %663 = vmatpush1.bf16.xpose.msra.mxu0 0
          %664 = vmatprep.subr.bf16.mxu0 0
          %665 = vmatpush1.bf16.xpose.msra.mxu0 0
          %666 = vmatprep.subr.bf16.mxu0 0
          %667 = vmatpush1.bf16.xpose.msra.mxu0 0
          %668 = vmatprep.subr.bf16.mxu0 0
          %669 = vmatpush1.bf16.xpose.msra.mxu0 0
          %670 = vmatprep.subr.bf16.mxu0 0
          %671 = vmatpush1.bf16.xpose.msra.mxu0 %v654
          %672 = vmatprep.subr.bf16.mxu0 0
          %673 = vmatpush2.bf16.xpose.msra.mxu0 0
          %674 = vmatprep.subr.bf16.mxu0 0
          %675 = vmatpush2.bf16.xpose.msra.mxu0 0
          %676 = vmatprep.subr.bf16.mxu0 0
          %677 = vmatpush2.bf16.xpose.msra.mxu0 0
          %678 = vmatprep.subr.bf16.mxu0 0
          %679 = vmatpush2.bf16.xpose.msra.mxu0 0
          %680 = vmatprep.subr.bf16.mxu0 0
          %681 = vmatpush2.bf16.xpose.msra.mxu0 0
          %682 = vmatprep.subr.bf16.mxu0 0
          %683 = vmatpush2.bf16.xpose.msra.mxu0 0
          %684 = vmatprep.subr.bf16.mxu0 0
          %685 = vmatpush2.bf16.xpose.msra.mxu0 0
          %686 = vmatprep.subr.bf16.mxu0 0
          %687 = vmatpush2.bf16.xpose.msra.mxu0 0
          %688 = vmatprep.mubr.bf16.mxu0 0
          %689 = vmatmul.mubr.bf16.gmra.mxu0 %v651
          %v690 = vpop.f32.mrf.mxu0
          %v691 = vadd.f32 0.0, %v690
          %v692 = vpop.f32.mrf.mxu0
          %v693 = vpop.f32.mrf.mxu0
          %v694 = vpop.f32.mrf.mxu0
          %695 = vdwg.mxu0
          %v696 = vsel %vm526, %v691, -inf
          %v697 = vsel %vm527, %v696, -inf
          %698 = vmax.xlane.f32.xlu0 %v697
          %v699 = vpop.xlane.xlu0 %698
          %v700 = vmax.f32 %v509, %v699
          %v701 = vsub.f32 %v509, %v700
          %v702 = vmul.f32 %v701, 1.442695
          %v703 = vpow.pop %v702
          %v704 = vsub.f32 %v696, %v700
          %v705 = vmul.f32 %v704, 1.442695
          %v706 = vpow.pop %v705
          %v707 = vmul.f32 %v703, %v513
          %v708 = vsel %vm527, %v706, 0.0
          %709 = vadd.xlane.f32.xlu0 %v708
          %v710 = vpop.xlane.xlu0 %709
          %v711 = vadd.f32 %v707, %v710
          %v712 = vmul.f32 %v703, %v517
          %v713 = vpack.c.bf16 %v706, %v706
          %714 = vrot.lane.b32.xlu0 %v594, 88
          %v715 = vpop.permute.xlu0 %714
          %v717 = vsel %vm527, %v713, 0
          %v720 = vsel %vm600, %v715, 0
          %722 = vmatprep.subr.bf16.mxu0 0
          %723 = vmatpush1.bf16.msra.mxu0 0
          %724 = vmatprep.subr.bf16.mxu0 0
          %725 = vmatpush1.bf16.msra.mxu0 0
          %726 = vmatprep.subr.bf16.mxu0 0
          %727 = vmatpush1.bf16.msra.mxu0 0
          %728 = vmatprep.subr.bf16.mxu0 0
          %729 = vmatpush1.bf16.msra.mxu0 0
          %730 = vmatprep.subr.bf16.mxu0 0
          %731 = vmatpush1.bf16.msra.mxu0 0
          %732 = vmatprep.subr.bf16.mxu0 0
          %733 = vmatpush1.bf16.msra.mxu0 0
          %734 = vmatprep.subr.bf16.mxu0 0
          %735 = vmatpush1.bf16.msra.mxu0 0
          %736 = vmatprep.subr.bf16.mxu0 0
          %737 = vmatpush1.bf16.msra.mxu0 %v720
          %738 = vmatprep.subr.bf16.mxu0 0
          %739 = vmatpush2.bf16.msra.mxu0 0
          %740 = vmatprep.subr.bf16.mxu0 0
          %741 = vmatpush2.bf16.msra.mxu0 0
          %742 = vmatprep.subr.bf16.mxu0 0
          %743 = vmatpush2.bf16.msra.mxu0 0
          %744 = vmatprep.subr.bf16.mxu0 0
          %745 = vmatpush2.bf16.msra.mxu0 0
          %746 = vmatprep.subr.bf16.mxu0 0
          %747 = vmatpush2.bf16.msra.mxu0 0
          %748 = vmatprep.subr.bf16.mxu0 0
          %749 = vmatpush2.bf16.msra.mxu0 0
          %750 = vmatprep.subr.bf16.mxu0 0
          %751 = vmatpush2.bf16.msra.mxu0 0
          %752 = vmatprep.subr.bf16.mxu0 0
          %753 = vmatpush2.bf16.msra.mxu0 0
          %754 = vmatprep.mubr.bf16.mxu0 0
          %755 = vmatmul.mubr.bf16.gmra.mxu0 %v717
          %v756 = vpop.f32.mrf.mxu0
          %v757 = vadd.f32 0.0, %v756
          %v758 = vpop.f32.mrf.mxu0
          %v759 = vpop.f32.mrf.mxu0
          %v760 = vpop.f32.mrf.mxu0
          %761 = vdwg.mxu0
          %v762 = vadd.f32 %v712, %v757
          %763 = vrot.lane.b32.xlu0 %v493, 112
          %v764 = vpop.permute.xlu0 %763
          %765 = vrot.lane.b32.xlu0 %v594, 112
          %v766 = vpop.permute.xlu0 %765
          %v768 = vsel %vm527, %v764, 0
          %v771 = vsel %vm527, %v766, 0
          %773 = vmatprep.subr.bf16.mxu0 0
          %774 = vmatpush1.bf16.xpose.msra.mxu0 0
          %775 = vmatprep.subr.bf16.mxu0 0
          %776 = vmatpush1.bf16.xpose.msra.mxu0 0
          %777 = vmatprep.subr.bf16.mxu0 0
          %778 = vmatpush1.bf16.xpose.msra.mxu0 0
          %779 = vmatprep.subr.bf16.mxu0 0
          %780 = vmatpush1.bf16.xpose.msra.mxu0 0
          %781 = vmatprep.subr.bf16.mxu0 0
          %782 = vmatpush1.bf16.xpose.msra.mxu0 0
          %783 = vmatprep.subr.bf16.mxu0 0
          %784 = vmatpush1.bf16.xpose.msra.mxu0 0
          %785 = vmatprep.subr.bf16.mxu0 0
          %786 = vmatpush1.bf16.xpose.msra.mxu0 0
          %787 = vmatprep.subr.bf16.mxu0 0
          %788 = vmatpush1.bf16.xpose.msra.mxu0 %v771
          %789 = vmatprep.subr.bf16.mxu0 0
          %790 = vmatpush2.bf16.xpose.msra.mxu0 0
          %791 = vmatprep.subr.bf16.mxu0 0
          %792 = vmatpush2.bf16.xpose.msra.mxu0 0
          %793 = vmatprep.subr.bf16.mxu0 0
          %794 = vmatpush2.bf16.xpose.msra.mxu0 0
          %795 = vmatprep.subr.bf16.mxu0 0
          %796 = vmatpush2.bf16.xpose.msra.mxu0 0
          %797 = vmatprep.subr.bf16.mxu0 0
          %798 = vmatpush2.bf16.xpose.msra.mxu0 0
          %799 = vmatprep.subr.bf16.mxu0 0
          %800 = vmatpush2.bf16.xpose.msra.mxu0 0
          %801 = vmatprep.subr.bf16.mxu0 0
          %802 = vmatpush2.bf16.xpose.msra.mxu0 0
          %803 = vmatprep.subr.bf16.mxu0 0
          %804 = vmatpush2.bf16.xpose.msra.mxu0 0
          %805 = vmatprep.mubr.bf16.mxu0 0
          %806 = vmatmul.mubr.bf16.gmra.mxu0 %v768
          %v807 = vpop.f32.mrf.mxu0
          %v808 = vadd.f32 0.0, %v807
          %v809 = vpop.f32.mrf.mxu0
          %v810 = vpop.f32.mrf.mxu0
          %v811 = vpop.f32.mrf.mxu0
          %812 = vdwg.mxu0
          %v813 = vsel %vm526, %v808, -inf
          %v814 = vsel %vm527, %v813, -inf
          %815 = vmax.xlane.f32.xlu0 %v814
          %v816 = vpop.xlane.xlu0 %815
          %v817 = vmax.f32 %v510, %v816
          %v818 = vsub.f32 %v510, %v817
          %v819 = vmul.f32 %v818, 1.442695
          %v820 = vpow.pop %v819
          %v821 = vsub.f32 %v813, %v817
          %v822 = vmul.f32 %v821, 1.442695
          %v823 = vpow.pop %v822
          %v824 = vmul.f32 %v820, %v514
          %v825 = vsel %vm527, %v823, 0.0
          %826 = vadd.xlane.f32.xlu0 %v825
          %v827 = vpop.xlane.xlu0 %826
          %v828 = vadd.f32 %v824, %v827
          %v829 = vmul.f32 %v820, %v518
          %v830 = vpack.c.bf16 %v823, %v823
          %831 = vrot.lane.b32.xlu0 %v594, 80
          %v832 = vpop.permute.xlu0 %831
          %v834 = vsel %vm527, %v830, 0
          %v837 = vsel %vm600, %v832, 0
          %839 = vmatprep.subr.bf16.mxu0 0
          %840 = vmatpush1.bf16.msra.mxu0 0
          %841 = vmatprep.subr.bf16.mxu0 0
          %842 = vmatpush1.bf16.msra.mxu0 0
          %843 = vmatprep.subr.bf16.mxu0 0
          %844 = vmatpush1.bf16.msra.mxu0 0
          %845 = vmatprep.subr.bf16.mxu0 0
          %846 = vmatpush1.bf16.msra.mxu0 0
          %847 = vmatprep.subr.bf16.mxu0 0
          %848 = vmatpush1.bf16.msra.mxu0 0
          %849 = vmatprep.subr.bf16.mxu0 0
          %850 = vmatpush1.bf16.msra.mxu0 0
          %851 = vmatprep.subr.bf16.mxu0 0
          %852 = vmatpush1.bf16.msra.mxu0 0
          %853 = vmatprep.subr.bf16.mxu0 0
          %854 = vmatpush1.bf16.msra.mxu0 %v837
          %855 = vmatprep.subr.bf16.mxu0 0
          %856 = vmatpush2.bf16.msra.mxu0 0
          %857 = vmatprep.subr.bf16.mxu0 0
          %858 = vmatpush2.bf16.msra.mxu0 0
          %859 = vmatprep.subr.bf16.mxu0 0
          %860 = vmatpush2.bf16.msra.mxu0 0
          %861 = vmatprep.subr.bf16.mxu0 0
          %862 = vmatpush2.bf16.msra.mxu0 0
          %863 = vmatprep.subr.bf16.mxu0 0
          %864 = vmatpush2.bf16.msra.mxu0 0
          %865 = vmatprep.subr.bf16.mxu0 0
          %866 = vmatpush2.bf16.msra.mxu0 0
          %867 = vmatprep.subr.bf16.mxu0 0
          %868 = vmatpush2.bf16.msra.mxu0 0
          %869 = vmatprep.subr.bf16.mxu0 0
          %870 = vmatpush2.bf16.msra.mxu0 0
          %871 = vmatprep.mubr.bf16.mxu0 0
          %872 = vmatmul.mubr.bf16.gmra.mxu0 %v834
          %v873 = vpop.f32.mrf.mxu0
          %v874 = vadd.f32 0.0, %v873
          %v875 = vpop.f32.mrf.mxu0
          %v876 = vpop.f32.mrf.mxu0
          %v877 = vpop.f32.mrf.mxu0
          %878 = vdwg.mxu0
          %v879 = vadd.f32 %v829, %v874
          %880 = vrot.lane.b32.xlu0 %v493, 104
          %v881 = vpop.permute.xlu0 %880
          %882 = vrot.lane.b32.xlu0 %v594, 104
          %v883 = vpop.permute.xlu0 %882
          %v885 = vsel %vm527, %v881, 0
          %v888 = vsel %vm527, %v883, 0
          %890 = vmatprep.subr.bf16.mxu0 0
          %891 = vmatpush1.bf16.xpose.msra.mxu0 0
          %892 = vmatprep.subr.bf16.mxu0 0
          %893 = vmatpush1.bf16.xpose.msra.mxu0 0
          %894 = vmatprep.subr.bf16.mxu0 0
          %895 = vmatpush1.bf16.xpose.msra.mxu0 0
          %896 = vmatprep.subr.bf16.mxu0 0
          %897 = vmatpush1.bf16.xpose.msra.mxu0 0
          %898 = vmatprep.subr.bf16.mxu0 0
          %899 = vmatpush1.bf16.xpose.msra.mxu0 0
          %900 = vmatprep.subr.bf16.mxu0 0
          %901 = vmatpush1.bf16.xpose.msra.mxu0 0
          %902 = vmatprep.subr.bf16.mxu0 0
          %903 = vmatpush1.bf16.xpose.msra.mxu0 0
          %904 = vmatprep.subr.bf16.mxu0 0
          %905 = vmatpush1.bf16.xpose.msra.mxu0 %v888
          %906 = vmatprep.subr.bf16.mxu0 0
          %907 = vmatpush2.bf16.xpose.msra.mxu0 0
          %908 = vmatprep.subr.bf16.mxu0 0
          %909 = vmatpush2.bf16.xpose.msra.mxu0 0
          %910 = vmatprep.subr.bf16.mxu0 0
          %911 = vmatpush2.bf16.xpose.msra.mxu0 0
          %912 = vmatprep.subr.bf16.mxu0 0
          %913 = vmatpush2.bf16.xpose.msra.mxu0 0
          %914 = vmatprep.subr.bf16.mxu0 0
          %915 = vmatpush2.bf16.xpose.msra.mxu0 0
          %916 = vmatprep.subr.bf16.mxu0 0
          %917 = vmatpush2.bf16.xpose.msra.mxu0 0
          %918 = vmatprep.subr.bf16.mxu0 0
          %919 = vmatpush2.bf16.xpose.msra.mxu0 0
          %920 = vmatprep.subr.bf16.mxu0 0
          %921 = vmatpush2.bf16.xpose.msra.mxu0 0
          %922 = vmatprep.mubr.bf16.mxu0 0
          %923 = vmatmul.mubr.bf16.gmra.mxu0 %v885
          %v924 = vpop.f32.mrf.mxu0
          %v925 = vadd.f32 0.0, %v924
          %v926 = vpop.f32.mrf.mxu0
          %v927 = vpop.f32.mrf.mxu0
          %v928 = vpop.f32.mrf.mxu0
          %929 = vdwg.mxu0
          %v930 = vsel %vm526, %v925, -inf
          %v931 = vsel %vm527, %v930, -inf
          %932 = vmax.xlane.f32.xlu0 %v931
          %v933 = vpop.xlane.xlu0 %932
          %v934 = vmax.f32 %v511, %v933
          %v935 = vsub.f32 %v511, %v934
          %v936 = vmul.f32 %v935, 1.442695
          %v937 = vpow.pop %v936
          %v938 = vsub.f32 %v930, %v934
          %v939 = vmul.f32 %v938, 1.442695
          %v940 = vpow.pop %v939
          %v941 = vmul.f32 %v937, %v515
          %v942 = vsel %vm527, %v940, 0.0
          %943 = vadd.xlane.f32.xlu0 %v942
          %v944 = vpop.xlane.xlu0 %943
          %v945 = vadd.f32 %v941, %v944
          %v946 = vmul.f32 %v937, %v519
          %v947 = vpack.c.bf16 %v940, %v940
          %948 = vrot.lane.b32.xlu0 %v594, 72
          %v949 = vpop.permute.xlu0 %948
          %v951 = vsel %vm527, %v947, 0
          %v954 = vsel %vm600, %v949, 0
          %956 = vmatprep.subr.bf16.mxu0 0
          %957 = vmatpush1.bf16.msra.mxu0 0
          %958 = vmatprep.subr.bf16.mxu0 0
          %959 = vmatpush1.bf16.msra.mxu0 0
          %960 = vmatprep.subr.bf16.mxu0 0
          %961 = vmatpush1.bf16.msra.mxu0 0
          %962 = vmatprep.subr.bf16.mxu0 0
          %963 = vmatpush1.bf16.msra.mxu0 0
          %964 = vmatprep.subr.bf16.mxu0 0
          %965 = vmatpush1.bf16.msra.mxu0 0
          %966 = vmatprep.subr.bf16.mxu0 0
          %967 = vmatpush1.bf16.msra.mxu0 0
          %968 = vmatprep.subr.bf16.mxu0 0
          %969 = vmatpush1.bf16.msra.mxu0 0
          %970 = vmatprep.subr.bf16.mxu0 0
          %971 = vmatpush1.bf16.msra.mxu0 %v954
          %972 = vmatprep.subr.bf16.mxu0 0
          %973 = vmatpush2.bf16.msra.mxu0 0
          %974 = vmatprep.subr.bf16.mxu0 0
          %975 = vmatpush2.bf16.msra.mxu0 0
          %976 = vmatprep.subr.bf16.mxu0 0
          %977 = vmatpush2.bf16.msra.mxu0 0
          %978 = vmatprep.subr.bf16.mxu0 0
          %979 = vmatpush2.bf16.msra.mxu0 0
          %980 = vmatprep.subr.bf16.mxu0 0
          %981 = vmatpush2.bf16.msra.mxu0 0
          %982 = vmatprep.subr.bf16.mxu0 0
          %983 = vmatpush2.bf16.msra.mxu0 0
          %984 = vmatprep.subr.bf16.mxu0 0
          %985 = vmatpush2.bf16.msra.mxu0 0
          %986 = vmatprep.subr.bf16.mxu0 0
          %987 = vmatpush2.bf16.msra.mxu0 0
          %988 = vmatprep.mubr.bf16.mxu0 0
          %989 = vmatmul.mubr.bf16.gmra.mxu0 %v951
          %v990 = vpop.f32.mrf.mxu0
          %v991 = vadd.f32 0.0, %v990
          %v992 = vpop.f32.mrf.mxu0
          %v993 = vpop.f32.mrf.mxu0
          %v994 = vpop.f32.mrf.mxu0
          %995 = vdwg.mxu0
          %v996 = vadd.f32 %v946, %v991
        $region69: #{tpu_custom_call.1} parent=47 // loop_footer
          %s505 = sadd.s32 %s503, 1
        $region70: #{tpu_custom_call.1} parent=47 // loop_footer_branch
          %502 = sbr.rel target = $region66
        $region71: #{tpu_custom_call.1} parent=47 // loop_exit
          _
        %v997 = vrcp.pop %v512
        %v998 = vmul.f32 %v516, %v997
        %v999 = vpack.c.bf16 %v998, %v998
        %v1000 = vrcp.pop %v513
        %v1001 = vmul.f32 %v517, %v1000
        %v1002 = vpack.c.bf16 %v1001, %v1001
        %v1003 = vrcp.pop %v514
        %v1004 = vmul.f32 %v518, %v1003
        %v1005 = vpack.c.bf16 %v1004, %v1004
        %v1006 = vrcp.pop %v515
        %v1007 = vmul.f32 %v519, %v1006
        %v1008 = vpack.c.bf16 %v1007, %v1007
        %1010 = vrot.lane.b32.xlu0 %v1002, 8
        %v1011 = vpop.permute.xlu0 %1010
        %1013 = vrot.lane.b32.xlu0 %v1005, 16
        %v1014 = vpop.permute.xlu0 %1013
        %1016 = vrot.lane.b32.xlu0 %v1008, 24
        %v1017 = vpop.permute.xlu0 %1016
        %vm1018 = vcmask 64512
        %v1021 = vsel %vm1018, %v999, %v1011
        %vm1022 = vcmask 130048
        %v1024 = vsel %vm1022, %v1021, %v1014
        %vm1025 = vcmask 195584
        %v1027 = vsel %vm1025, %v1024, %v1017
        %v1028 = vld [vmem:[#allocation9] sm:$0xf]
        %v1029 = vld [vmem:[#allocation9 + $0x4] sm:$0xf]
        %v1030 = vld [vmem:[#allocation9 + $0x8] sm:$0xf]
        %v1031 = vld [vmem:[#allocation9 + $0xc] sm:$0xf]
        %v1032 = vld [vmem:[%s6] sm:$0x1]
        %v1034 = vlaneseq
        %v1035 = vshrl.u32 %v1034, 7
        %v1036 = vsub.s32 0, %v1035
        %v1037 = vrot.slane %v1032, %v1036
        %v1043 = vunpack.c.l.b16 %v1028
        %v1044 = vunpack.c.l.b16 %v1029
        %v1045 = vunpack.c.l.b16 %v1030
        %v1046 = vunpack.c.l.b16 %v1031
        %v1047 = vpack.c.b16 %v1044, %v1043
        %v1048 = vpack.c.b16 %v1046, %v1045
        %v1051 = vsel %vm380, %v1027, 0
        %1053 = vmatprep.subr.bf16.mxu0 0
        %1054 = vmatpush1.bf16.msra.mxu0 0
        %1055 = vmatprep.subr.bf16.mxu0 0
        %1056 = vmatpush1.bf16.msra.mxu0 0
        %1057 = vmatprep.subr.bf16.mxu0 0
        %1058 = vmatpush1.bf16.msra.mxu0 0
        %1059 = vmatprep.subr.bf16.mxu0 0
        %1060 = vmatpush1.bf16.msra.mxu0 0
        %1061 = vmatprep.subr.bf16.mxu0 0
        %1062 = vmatpush1.bf16.msra.mxu0 0
        %1063 = vmatprep.subr.bf16.mxu0 0
        %1064 = vmatpush1.bf16.msra.mxu0 0
        %1065 = vmatprep.subr.bf16.mxu0 0
        %1066 = vmatpush1.bf16.msra.mxu0 %v1048
        %1067 = vmatprep.subr.bf16.mxu0 0
        %1068 = vmatpush1.bf16.msra.mxu0 %v1047
        %1069 = vmatprep.subr.bf16.mxu0 0
        %1070 = vmatpush2.bf16.msra.mxu0 0
        %1071 = vmatprep.subr.bf16.mxu0 0
        %1072 = vmatpush2.bf16.msra.mxu0 0
        %1073 = vmatprep.subr.bf16.mxu0 0
        %1074 = vmatpush2.bf16.msra.mxu0 0
        %1075 = vmatprep.subr.bf16.mxu0 0
        %1076 = vmatpush2.bf16.msra.mxu0 0
        %1077 = vmatprep.subr.bf16.mxu0 0
        %1078 = vmatpush2.bf16.msra.mxu0 0
        %1079 = vmatprep.subr.bf16.mxu0 0
        %1080 = vmatpush2.bf16.msra.mxu0 0
        %1081 = vmatprep.subr.bf16.mxu0 0
        %1082 = vmatpush2.bf16.msra.mxu0 0
        %1083 = vmatprep.subr.bf16.mxu0 0
        %1084 = vmatpush2.bf16.msra.mxu0 0
        %1085 = vmatprep.mubr.bf16.mxu0 0
        %1086 = vmatmul.mubr.bf16.gmra.mxu0 %v1051
        %v1087 = vpop.f32.mrf.mxu0
        %v1088 = vadd.f32 %v1037, %v1087
        %v1089 = vpop.f32.mrf.mxu0
        %v1090 = vpop.f32.mrf.mxu0
        %v1091 = vpop.f32.mrf.mxu0
        %1092 = vdwg.mxu0
        %1093 = vst.msk [vmem:[%s354] sm:$0xff] %vm380, %v1088
        %s1094 = sand.u32 %s202, 1
        %s1095 = scalar_lea.sflag [#allocation5], %s1094
        %s1096 = sand.u32 %s202, 1
        %s1097 = smul.addr %s1096, 8
        %s1098 = scalar_lea.vmem [#allocation11], %s1097
        // Predicated region
        $region72: #{tpu_custom_call.1} parent=47 // pred_check
          %p1099 = pneg %p212
        $region73: #{tpu_custom_call.1} parent=47 // pred_check_branch
          %1101 = sbr.rel (%p1099) target = $region75
        $region74: #{tpu_custom_call.1} parent=47 // pred_region
          %s1103 = ssub.s32 128, 128
          %1104 = vsyncadd %s1095, %s1103
          %s1105 = sadd.s32 %s31, %s30
          %s1106 = smul.addr %s1105, 128
          %s1107 = scalar_lea.hbm %s7, %s1106
          %s1109 = sshll.u32 %s1098, 4
          %s1110 = int_to_ptr.vmem [resolvable:$true] %s1109
          %1112 = dma.vmem_to_hbm [thread:$0]  %s1110, 128, %s1107, %s1095
        $region75: #{tpu_custom_call.1} parent=47 // pred_fallthru
          _
      $region48: #{tpu_custom_call.1} parent=5 // pred_fallthru
        _
      %p1113 = scmp.le.s32.totalorder 2, %s21
      // Predicated region
      $region76: #{tpu_custom_call.1} parent=5 // pred_check
        %p1114 = pneg %p1113
      $region77: #{tpu_custom_call.1} parent=5 // pred_check_branch
        %1116 = sbr.rel (%p1114) target = $region79
      $region78: #{tpu_custom_call.1} parent=5 // pred_region
        %s1117 = ssub.s32 %s21, 2
        // Predicated region
        $region80: #{tpu_custom_call.1} parent=78 // pred_check
          %p1118 = pneg %p218
        $region81: #{tpu_custom_call.1} parent=78 // pred_check_branch
          %1120 = sbr.rel (%p1118) target = $region83
        $region82: #{tpu_custom_call.1} parent=78 // pred_region
          %s1121 = sand.u32 %s203, 1
          %s1122 = scalar_lea.sflag [#allocation5], %s1121
          %s1123 = sand.u32 %s203, 1
          %s1124 = smul.addr %s1123, 8
          %s1125 = scalar_lea.vmem [#allocation11], %s1124
          %1126 = dma.done %s1122, 128
        $region83: #{tpu_custom_call.1} parent=78 // pred_fallthru
          _
      $region79: #{tpu_custom_call.1} parent=5 // pred_fallthru
        _
    $region6: #{tpu_custom_call.1} parent=1 // loop_footer
      %s25 = sadd.s32 1, %s21
    $region7: #{tpu_custom_call.1} parent=1 // loop_footer_branch
      %20 = sbr.rel target = $region3
    $region8: #{tpu_custom_call.1} parent=1 // loop_exit
      _
    %1127 = vsyncpa [#allocation4], 1
    %s1128 = scalar_lea.sflag [#allocation4], 1
    %1129 = vsyncpa %s1128, 1
    %1130 = vsyncpa [#allocation7], 1
    %1131 = vsyncpa [#allocation10], 1
    %1132 = vsyncpa [#allocation5], 1
    %s1133 = scalar_lea.sflag [#allocation5], 1
    %1134 = vsyncpa %s1133, 1

// kernel: tpu_custom_call.1
$region0: #{tpu_custom_call.1}
  #allocation0 [shape = 'u32[]', space=smem, size = 0x4, offset = 0x4, fixed_abs, tag = 'smem constant byte address 0x4 - core index']
  #allocation1 [shape = 'u32[144,128]{1,0:T(1,128)}', space=vmem, size = 0x12000, scoped, tag = 'internal scratch']
  #allocation2 [shape = 'bf16[1,8,64]{2,1,0:T(8,128)(2,1)}', space=vmem, size = 0x800, scoped, tag = 'scratch operand']
  %s0 = inlined_call_operand.hbm [shape: bf16[2,8,32], index: 0, kind: input, shape index: {}]
  %s1 = inlined_call_operand.hbm [shape: bf16[32,32], index: 1, kind: input, shape index: {}]
  %s2 = inlined_call_operand.vmem [shape: f32[1,32], index: 2, kind: input, shape index: {}]
  %s3 = inlined_call_operand.hbm [shape: bf16[32,64], index: 3, kind: input, shape index: {}]
  %s4 = inlined_call_operand.vmem [shape: f32[1,64], index: 4, kind: input, shape index: {}]
  %s5 = inlined_call_operand.hbm [shape: bf16[32,32], index: 5, kind: input, shape index: {}]
  %s6 = inlined_call_operand.vmem [shape: f32[1,32], index: 6, kind: input, shape index: {}]
  %s7 = inlined_call_operand.hbm [shape: f32[2,8,32], index: 7, kind: output, shape index: {}]
  %s8 = sld [smem:[#allocation0]]
  $region84: #{tpu_custom_call.1} parent=0
    _
  %s10 = ssub.s32 1, %s8
  %s11 = scalar_select 0, %s10, %s8
  $region1: #{tpu_custom_call.1} parent=0
    #allocation3 [shape = 'u8[4096]{0}', space=vmem, size = 0x1000, scoped, tag = 'input window, operand 0']
    #allocation4 [shape = 's32[2]{0}', space=sflag, size = 0x8, scoped, tag = 'scoped memory for tpu_custom_call.1']
    #allocation5 [shape = 's32[2]{0}', space=sflag, size = 0x8, scoped, tag = 'scoped memory for tpu_custom_call.1']
    #allocation6 [shape = 'u8[8192]{0}', space=vmem, size = 0x2000, scoped, tag = 'input window, operand 1, single buffered']
    #allocation7 [shape = 's32[1]{0}', space=sflag, size = 0x4, scoped, tag = 'scoped memory for tpu_custom_call.1']
    #allocation8 [shape = 'u8[8192]{0}', space=vmem, size = 0x2000, scoped, tag = 'input window, operand 3, single buffered']
    #allocation9 [shape = 'u8[8192]{0}', space=vmem, size = 0x2000, scoped, tag = 'input window, operand 5, single buffered']
    #allocation10 [shape = 's32[1]{0}', space=sflag, size = 0x4, scoped, tag = 'scoped memory for tpu_custom_call.1']
    #allocation11 [shape = 'u8[8192]{0}', space=vmem, size = 0x2000, scoped, tag = 'output window, operand 0']
    %12 = vsyncpa [#allocation4], 0
    %s13 = scalar_lea.sflag [#allocation4], 1
    %14 = vsyncpa %s13, 0
    %15 = vsyncpa [#allocation7], 0
    %16 = vsyncpa [#allocation10], 0
    %17 = vsyncpa [#allocation5], 0
    %s18 = scalar_lea.sflag [#allocation5], 1
    %19 = vsyncpa %s18, 0
    loop: start=0, step=1, limit=4
    $region2: #{tpu_custom_call.1} parent=1 // loop_pre_header
      _
    $region3: #{tpu_custom_call.1} parent=1 // loop_header
      %s21 = sphi 0, %s25
      %p22 = scmp.ge.s32.totalorder %s21, 4
      %s28 = sphi 0, %s40
      %s29 = sphi 0, %s36
      %s30 = sphi 0, %s28
      %s31 = sphi 0, %s29
      %s32 = sphi 0, %s30
      %s33 = sphi 0, %s31
      %s45 = sphi 0, %s47
      %s48 = sphi 0, %s45
      %s49 = sphi 0, %s48
      %s65 = sphi 0, %s49
      %s69 = sphi 0, %s69
      %s71 = sphi 0, %s69
      %s72 = sphi 0, %s71
      %s86 = sphi 0, %s72
      %s90 = sphi 0, %s90
      %s92 = sphi 0, %s90
      %s93 = sphi 0, %s92
      %s107 = sphi 0, %s93
      %s111 = sphi 0, %s111
      %s113 = sphi 0, %s111
      %s114 = sphi 0, %s113
      %s128 = sphi 0, %s114
      %s132 = sphi 0, %s132
      %s134 = sphi 0, %s132
      %s135 = sphi 0, %s134
      %s149 = sphi 0, %s135
      %s153 = sphi 0, %s153
      %s155 = sphi 0, %s153
      %s156 = sphi 0, %s155
      %s170 = sphi 0, %s156
      %s174 = sphi 0, %s174
      %s176 = sphi 0, %s174
      %s177 = sphi 0, %s176
      %s191 = sphi 0, %s177
      %s199 = sphi 0, %s201
      %s202 = sphi 0, %s199
      %s203 = sphi 0, %s202
      %s219 = sphi 0, %s203
    $region4: #{tpu_custom_call.1} parent=1 // loop_header_branch
      %24 = sbr.rel (%p22) target = $region8
    $region5: #{tpu_custom_call.1} parent=1 // loop_body
      %s26 = ssub.s32 %s21, 1
      %s27 = ssub.s32 %s21, 2
      %s34 = sadd.s32 1, %s29
      %p35 = scmp.ge.s32.totalorder %s34, 1
      %s36 = scalar_select %p35, 0, %s34
      %s37 = sadd.s32 1, %s28
      %s38 = scalar_select %p35, %s37, %s28
      %p39 = scmp.ge.s32.totalorder %s38, 2
      %s40 = scalar_select %p39, 0, %s38
      %s41 = ssub.s32 %s28, %s40
      %s42 = ssub.s32 %s29, %s36
      %s43 = sor.u32 %s41, %s42
      %p44 = scmp.eq.s32.totalorder %s43, 0
      %s46 = sadd.s32 %s45, 1
      %s47 = scalar_select %p44, %s45, %s46
      %p50 = pneg %p44
      %p51 = scmp.eq.s32.totalorder %s21, 1
      %p52 = por %p50, %p51
      %p53 = scmp.ne.s32.totalorder %s45, %s48
      %p54 = scmp.eq.s32.totalorder %s21, 0
      %p55 = por %p53, %p54
      %p56 = scmp.ne.s32.totalorder %s45, %s48
      %p57 = scmp.eq.s32.totalorder %s26, 1
      %p58 = por %p56, %p57
      %p59 = scmp.ne.s32.totalorder %s48, %s49
      %p60 = scmp.eq.s32.totalorder %s26, 0
      %p61 = por %p59, %p60
      %p62 = scmp.ne.s32.totalorder %s48, %s49
      %p63 = scmp.eq.s32.totalorder %s27, 1
      %p64 = por %p62, %p63
      %p66 = scmp.ne.s32.totalorder %s49, %s65
      %p67 = scmp.eq.s32.totalorder %s27, 0
      %p68 = por %p66, %p67
      %s70 = sadd.s32 %s69, 1
      %p73 = scmp.eq.s32.totalorder %s21, 1
      %p74 = scmp.ne.s32.totalorder %s69, %s71
      %p75 = scmp.eq.s32.totalorder %s21, 0
      %p76 = por %p74, %p75
      %p77 = scmp.ne.s32.totalorder %s69, %s71
      %p78 = scmp.eq.s32.totalorder %s26, 1
      %p79 = por %p77, %p78
      %p80 = scmp.ne.s32.totalorder %s71, %s72
      %p81 = scmp.eq.s32.totalorder %s26, 0
      %p82 = por %p80, %p81
      %p83 = scmp.ne.s32.totalorder %s71, %s72
      %p84 = scmp.eq.s32.totalorder %s27, 1
      %p85 = por %p83, %p84
      %p87 = scmp.ne.s32.totalorder %s72, %s86
      %p88 = scmp.eq.s32.totalorder %s27, 0
      %p89 = por %p87, %p88
      %s91 = sadd.s32 %s90, 1
      %p94 = scmp.eq.s32.totalorder %s21, 1
      %p95 = scmp.ne.s32.totalorder %s90, %s92
      %p96 = scmp.eq.s32.totalorder %s21, 0
      %p97 = por %p95, %p96
      %p98 = scmp.ne.s32.totalorder %s90, %s92
      %p99 = scmp.eq.s32.totalorder %s26, 1
      %p100 = por %p98, %p99
      %p101 = scmp.ne.s32.totalorder %s92, %s93
      %p102 = scmp.eq.s32.totalorder %s26, 0
      %p103 = por %p101, %p102
      %p104 = scmp.ne.s32.totalorder %s92, %s93
      %p105 = scmp.eq.s32.totalorder %s27, 1
      %p106 = por %p104, %p105
      %p108 = scmp.ne.s32.totalorder %s93, %s107
      %p109 = scmp.eq.s32.totalorder %s27, 0
      %p110 = por %p108, %p109
      %s112 = sadd.s32 %s111, 1
      %p115 = scmp.eq.s32.totalorder %s21, 1
      %p116 = scmp.ne.s32.totalorder %s111, %s113
      %p117 = scmp.eq.s32.totalorder %s21, 0
      %p118 = por %p116, %p117
      %p119 = scmp.ne.s32.totalorder %s111, %s113
      %p120 = scmp.eq.s32.totalorder %s26, 1
      %p121 = por %p119, %p120
      %p122 = scmp.ne.s32.totalorder %s113, %s114
      %p123 = scmp.eq.s32.totalorder %s26, 0
      %p124 = por %p122, %p123
      %p125 = scmp.ne.s32.totalorder %s113, %s114
      %p126 = scmp.eq.s32.totalorder %s27, 1
      %p127 = por %p125, %p126
      %p129 = scmp.ne.s32.totalorder %s114, %s128
      %p130 = scmp.eq.s32.totalorder %s27, 0
      %p131 = por %p129, %p130
      %s133 = sadd.s32 %s132, 1
      %p136 = scmp.eq.s32.totalorder %s21, 1
      %p137 = scmp.ne.s32.totalorder %s132, %s134
      %p138 = scmp.eq.s32.totalorder %s21, 0
      %p139 = por %p137, %p138
      %p140 = scmp.ne.s32.totalorder %s132, %s134
      %p141 = scmp.eq.s32.totalorder %s26, 1
      %p142 = por %p140, %p141
      %p143 = scmp.ne.s32.totalorder %s134, %s135
      %p144 = scmp.eq.s32.totalorder %s26, 0
      %p145 = por %p143, %p144
      %p146 = scmp.ne.s32.totalorder %s134, %s135
      %p147 = scmp.eq.s32.totalorder %s27, 1
      %p148 = por %p146, %p147
      %p150 = scmp.ne.s32.totalorder %s135, %s149
      %p151 = scmp.eq.s32.totalorder %s27, 0
      %p152 = por %p150, %p151
      %s154 = sadd.s32 %s153, 1
      %p157 = scmp.eq.s32.totalorder %s21, 1
      %p158 = scmp.ne.s32.totalorder %s153, %s155
      %p159 = scmp.eq.s32.totalorder %s21, 0
      %p160 = por %p158, %p159
      %p161 = scmp.ne.s32.totalorder %s153, %s155
      %p162 = scmp.eq.s32.totalorder %s26, 1
      %p163 = por %p161, %p162
      %p164 = scmp.ne.s32.totalorder %s155, %s156
      %p165 = scmp.eq.s32.totalorder %s26, 0
      %p166 = por %p164, %p165
      %p167 = scmp.ne.s32.totalorder %s155, %s156
      %p168 = scmp.eq.s32.totalorder %s27, 1
      %p169 = por %p167, %p168
      %p171 = scmp.ne.s32.totalorder %s156, %s170
      %p172 = scmp.eq.s32.totalorder %s27, 0
      %p173 = por %p171, %p172
      %s175 = sadd.s32 %s174, 1
      %p178 = scmp.eq.s32.totalorder %s21, 1
      %p179 = scmp.ne.s32.totalorder %s174, %s176
      %p180 = scmp.eq.s32.totalorder %s21, 0
      %p181 = por %p179, %p180
      %p182 = scmp.ne.s32.totalorder %s174, %s176
      %p183 = scmp.eq.s32.totalorder %s26, 1
      %p184 = por %p182, %p183
      %p185 = scmp.ne.s32.totalorder %s176, %s177
      %p186 = scmp.eq.s32.totalorder %s26, 0
      %p187 = por %p185, %p186
      %p188 = scmp.ne.s32.totalorder %s176, %s177
      %p189 = scmp.eq.s32.totalorder %s27, 1
      %p190 = por %p188, %p189
      %p192 = scmp.ne.s32.totalorder %s177, %s191
      %p193 = scmp.eq.s32.totalorder %s27, 0
      %p194 = por %p192, %p193
      %s195 = ssub.s32 %s28, %s40
      %s196 = ssub.s32 %s29, %s36
      %s197 = sor.u32 %s195, %s196
      %p198 = scmp.eq.s32.totalorder %s197, 0
      %s200 = sadd.s32 %s199, 1
      %s201 = scalar_select %p198, %s199, %s200
      %p204 = pneg %p198
      %p205 = scmp.eq.s32.totalorder %s21, 1
      %p206 = por %p204, %p205
      %p207 = scmp.ne.s32.totalorder %s199, %s202
      %p208 = scmp.eq.s32.totalorder %s21, 0
      %p209 = por %p207, %p208
      %p210 = scmp.ne.s32.totalorder %s199, %s202
      %p211 = scmp.eq.s32.totalorder %s26, 1
      %p212 = por %p210, %p211
      %p213 = scmp.ne.s32.totalorder %s202, %s203
      %p214 = scmp.eq.s32.totalorder %s26, 0
      %p215 = por %p213, %p214
      %p216 = scmp.ne.s32.totalorder %s202, %s203
      %p217 = scmp.eq.s32.totalorder %s27, 1
      %p218 = por %p216, %p217
      %p220 = scmp.ne.s32.totalorder %s203, %s219
      %p221 = scmp.eq.s32.totalorder %s27, 0
      %p222 = por %p220, %p221
      %p223 = scmp.le.s32.totalorder 1, %s21
      %p224 = scmp.lt.s32.totalorder %s21, 3
      %p225 = pnand %p223, %p224
      %p226 = pneg %p225
      // Predicated region
      $region9: #{tpu_custom_call.1} parent=5 // pred_check
        _
      $region10: #{tpu_custom_call.1} parent=5 // pred_check_branch
        %228 = sbr.rel (%p225) target = $region12
      $region11: #{tpu_custom_call.1} parent=5 // pred_region
        %s229 = ssub.s32 %s21, 1
        // Predicated region
        $region13: #{tpu_custom_call.1} parent=11 // pred_check
          %p230 = pneg %p82
        $region14: #{tpu_custom_call.1} parent=11 // pred_check_branch
          %232 = sbr.rel (%p230) target = $region16
        $region15: #{tpu_custom_call.1} parent=11 // pred_region
          %s234 = ssub.s32 256, 256
          %235 = vsyncadd [#allocation7], %s234
          %s236 = sshll.u32 [#allocation6], 4
          %s237 = int_to_ptr.vmem [resolvable:$true] %s236
          %242 = dma.hbm_to_vmem [thread:$0]  %s1, 256, %s237, [#allocation7], 64, 64, 4
        $region16: #{tpu_custom_call.1} parent=11 // pred_fallthru
          _
        // Predicated region
        $region17: #{tpu_custom_call.1} parent=11 // pred_check
          %p243 = pneg %p103
        $region18: #{tpu_custom_call.1} parent=11 // pred_check_branch
          %245 = sbr.rel (%p243) target = $region20
        $region19: #{tpu_custom_call.1} parent=11 // pred_region
          _
        $region20: #{tpu_custom_call.1} parent=11 // pred_fallthru
          _
        // Predicated region
        $region21: #{tpu_custom_call.1} parent=11 // pred_check
          %p246 = pneg %p124
        $region22: #{tpu_custom_call.1} parent=11 // pred_check_branch
          %248 = sbr.rel (%p246) target = $region24
        $region23: #{tpu_custom_call.1} parent=11 // pred_region
          %s250 = ssub.s32 256, 256
          %251 = vsyncadd [#allocation7], %s250
          %s252 = sshll.u32 [#allocation8], 4
          %s253 = int_to_ptr.vmem [resolvable:$true] %s252
          %258 = dma.hbm_to_vmem [thread:$0]  %s3, 256, %s253, [#allocation7], 64, 64, 4
        $region24: #{tpu_custom_call.1} parent=11 // pred_fallthru
          _
        // Predicated region
        $region25: #{tpu_custom_call.1} parent=11 // pred_check
          %p259 = pneg %p145
        $region26: #{tpu_custom_call.1} parent=11 // pred_check_branch
          %261 = sbr.rel (%p259) target = $region28
        $region27: #{tpu_custom_call.1} parent=11 // pred_region
          _
        $region28: #{tpu_custom_call.1} parent=11 // pred_fallthru
          _
        // Predicated region
        $region29: #{tpu_custom_call.1} parent=11 // pred_check
          %p262 = pneg %p166
        $region30: #{tpu_custom_call.1} parent=11 // pred_check_branch
          %264 = sbr.rel (%p262) target = $region32
        $region31: #{tpu_custom_call.1} parent=11 // pred_region
          %s266 = ssub.s32 256, 256
          %267 = vsyncadd [#allocation10], %s266
          %s268 = sshll.u32 [#allocation9], 4
          %s269 = int_to_ptr.vmem [resolvable:$true] %s268
          %274 = dma.hbm_to_vmem [thread:$0]  %s5, 256, %s269, [#allocation10], 64, 64, 4
        $region32: #{tpu_custom_call.1} parent=11 // pred_fallthru
          _
        // Predicated region
        $region33: #{tpu_custom_call.1} parent=11 // pred_check
          %p275 = pneg %p187
        $region34: #{tpu_custom_call.1} parent=11 // pred_check_branch
          %277 = sbr.rel (%p275) target = $region36
        $region35: #{tpu_custom_call.1} parent=11 // pred_region
          _
        $region36: #{tpu_custom_call.1} parent=11 // pred_fallthru
          _
      $region12: #{tpu_custom_call.1} parent=5 // pred_fallthru
        _
      %p278 = scmp.lt.s32.totalorder %s21, 2
      // Predicated region
      $region37: #{tpu_custom_call.1} parent=5 // pred_check
        %p279 = pneg %p278
      $region38: #{tpu_custom_call.1} parent=5 // pred_check_branch
        %281 = sbr.rel (%p279) target = $region40
      $region39: #{tpu_custom_call.1} parent=5 // pred_region
        // Predicated region
        $region41: #{tpu_custom_call.1} parent=39 // pred_check
          %p282 = pneg %p55
        $region42: #{tpu_custom_call.1} parent=39 // pred_check_branch
          %284 = sbr.rel (%p282) target = $region44
        $region43: #{tpu_custom_call.1} parent=39 // pred_region
          %s285 = sand.u32 %s45, 1
          %s286 = scalar_lea.sflag [#allocation4], %s285
          %s287 = sand.u32 %s45, 1
          %s288 = smul.addr %s287, 4
          %s289 = scalar_lea.vmem [#allocation3], %s288
          %s291 = ssub.s32 64, 64
          %292 = vsyncadd %s286, %s291
          %s293 = sadd.s32 %s29, %s28
          %s294 = smul.addr %s293, 64
          %s295 = scalar_lea.hbm %s0, %s294
          %s297 = sshll.u32 %s289, 4
          %s298 = int_to_ptr.vmem [resolvable:$true] %s297
          %300 = dma.hbm_to_vmem [thread:$0]  %s295, 64, %s298, %s286
        $region44: #{tpu_custom_call.1} parent=39 // pred_fallthru
          _
      $region40: #{tpu_custom_call.1} parent=5 // pred_fallthru
        _
      %p301 = scmp.le.s32.totalorder 1, %s21
      %p302 = scmp.lt.s32.totalorder %s21, 3
      %p303 = pnand %p301, %p302
      %p304 = pneg %p303
      // Predicated region
      $region45: #{tpu_custom_call.1} parent=5 // pred_check
        _
      $region46: #{tpu_custom_call.1} parent=5 // pred_check_branch
        %306 = sbr.rel (%p303) target = $region48
      $region47: #{tpu_custom_call.1} parent=5 // pred_region
        %s307 = ssub.s32 %s21, 1
        %s308 = sand.u32 %s48, 1
        %s309 = scalar_lea.sflag [#allocation4], %s308
        %s310 = sand.u32 %s48, 1
        %s311 = smul.addr %s310, 4
        %s312 = scalar_lea.vmem [#allocation3], %s311
        // Predicated region
        $region49: #{tpu_custom_call.1} parent=47 // pred_check
          %p313 = pneg %p61
        $region50: #{tpu_custom_call.1} parent=47 // pred_check_branch
          %315 = sbr.rel (%p313) target = $region52
        $region51: #{tpu_custom_call.1} parent=47 // pred_region
          %316 = dma.done %s309, 64
        $region52: #{tpu_custom_call.1} parent=47 // pred_fallthru
          _
        // Predicated region
        $region53: #{tpu_custom_call.1} parent=47 // pred_check
          %p317 = pneg %p82
        $region54: #{tpu_custom_call.1} parent=47 // pred_check_branch
          %319 = sbr.rel (%p317) target = $region56
        $region55: #{tpu_custom_call.1} parent=47 // pred_region
          %320 = dma.done [#allocation7], 256
        $region56: #{tpu_custom_call.1} parent=47 // pred_fallthru
          _
        // Predicated region
        $region57: #{tpu_custom_call.1} parent=47 // pred_check
          %p321 = pneg %p124
        $region58: #{tpu_custom_call.1} parent=47 // pred_check_branch
          %323 = sbr.rel (%p321) target = $region60
        $region59: #{tpu_custom_call.1} parent=47 // pred_region
          %324 = dma.done [#allocation7], 256
        $region60: #{tpu_custom_call.1} parent=47 // pred_fallthru
          _
        // Predicated region
        $region61: #{tpu_custom_call.1} parent=47 // pred_check
          %p325 = pneg %p166
        $region62: #{tpu_custom_call.1} parent=47 // pred_check_branch
          %327 = sbr.rel (%p325) target = $region64
        $region63: #{tpu_custom_call.1} parent=47 // pred_region
          %328 = dma.done [#allocation10], 256
        $region64: #{tpu_custom_call.1} parent=47 // pred_fallthru
          _
        %s329 = sand.u32 %s48, 1
        %s330 = scalar_lea.sflag [#allocation4], %s329
        %s331 = sand.u32 %s48, 1
        %s332 = smul.addr %s331, 4
        %s333 = scalar_lea.vmem [#allocation3], %s332
        %p334 = pneg %p61
        %p335 = pneg %p58
        %p336 = pneg %p82
        %p337 = pneg %p79
        %p338 = pneg %p103
        %p339 = pneg %p100
        %p340 = pneg %p124
        %p341 = pneg %p121
        %p342 = pneg %p145
        %p343 = pneg %p142
        %p344 = pneg %p166
        %p345 = pneg %p163
        %p346 = pneg %p187
        %p347 = pneg %p184
        %p348 = pneg %p215
        %p349 = pneg %p212
        %s350 = sand.u32 %s202, 1
        %s351 = scalar_lea.sflag [#allocation5], %s350
        %s352 = sand.u32 %s202, 1
        %s353 = smul.addr %s352, 8
        %s354 = scalar_lea.vmem [#allocation11], %s353
        %v356 = vld [vmem:[%s312] sm:$0xf]
        %v357 = vld [vmem:[#allocation8] sm:$0xf]
        %v358 = vld [vmem:[#allocation8 + $0x4] sm:$0xf]
        %v359 = vld [vmem:[#allocation8 + $0x8] sm:$0xf]
        %v360 = vld [vmem:[#allocation8 + $0xc] sm:$0xf]
        %v361 = vld [vmem:[%s4] sm:$0x1]
        %v363 = vlaneseq
        %v364 = vshrl.u32 %v363, 7
        %v365 = vsub.s32 0, %v364
        %v366 = vrot.slane %v361, %v365
        %v372 = vunpack.c.l.b16 %v357
        %v373 = vunpack.c.l.b16 %v358
        %v374 = vunpack.c.l.b16 %v359
        %v375 = vunpack.c.l.b16 %v360
        %v376 = vpack.c.b16 %v373, %v372
        %v377 = vpack.c.b16 %v375, %v374
        %vm380 = vcmask 261120
        %v382 = vsel %vm380, %v356, 0
        %384 = vmatprep.subr.bf16.mxu0 0
        %385 = vmatpush1.bf16.msra.mxu0 0
        %386 = vmatprep.subr.bf16.mxu0 0
        %387 = vmatpush1.bf16.msra.mxu0 0
        %388 = vmatprep.subr.bf16.mxu0 0
        %389 = vmatpush1.bf16.msra.mxu0 0
        %390 = vmatprep.subr.bf16.mxu0 0
        %391 = vmatpush1.bf16.msra.mxu0 0
        %392 = vmatprep.subr.bf16.mxu0 0
        %393 = vmatpush1.bf16.msra.mxu0 0
        %394 = vmatprep.subr.bf16.mxu0 0
        %395 = vmatpush1.bf16.msra.mxu0 0
        %396 = vmatprep.subr.bf16.mxu0 0
        %397 = vmatpush1.bf16.msra.mxu0 %v377
        %398 = vmatprep.subr.bf16.mxu0 0
        %399 = vmatpush1.bf16.msra.mxu0 %v376
        %400 = vmatprep.subr.bf16.mxu0 0
        %401 = vmatpush2.bf16.msra.mxu0 0
        %402 = vmatprep.subr.bf16.mxu0 0
        %403 = vmatpush2.bf16.msra.mxu0 0
        %404 = vmatprep.subr.bf16.mxu0 0
        %405 = vmatpush2.bf16.msra.mxu0 0
        %406 = vmatprep.subr.bf16.mxu0 0
        %407 = vmatpush2.bf16.msra.mxu0 0
        %408 = vmatprep.subr.bf16.mxu0 0
        %409 = vmatpush2.bf16.msra.mxu0 0
        %410 = vmatprep.subr.bf16.mxu0 0
        %411 = vmatpush2.bf16.msra.mxu0 0
        %412 = vmatprep.subr.bf16.mxu0 0
        %413 = vmatpush2.bf16.msra.mxu0 0
        %414 = vmatprep.subr.bf16.mxu0 0
        %415 = vmatpush2.bf16.msra.mxu0 0
        %416 = vmatprep.mubr.bf16.mxu0 0
        %417 = vmatmul.mubr.bf16.gmra.mxu0 %v382
        %v418 = vpop.f32.mrf.mxu0
        %v419 = vadd.f32 %v366, %v418
        %v420 = vpop.f32.mrf.mxu0
        %v421 = vpop.f32.mrf.mxu0
        %v422 = vpop.f32.mrf.mxu0
        %423 = vdwg.mxu0
        %v424 = vpack.c.bf16 %v419, %v419
        %s425 = smul.addr %s31, 4
        %s426 = scalar_lea.vmem [#allocation2], %s425
        %vm427 = vcmask 519168
        %428 = vst.msk [vmem:[%s426] sm:$0xf] %vm427, %v424
        %v429 = vld [vmem:[#allocation6] sm:$0xf]
        %v430 = vld [vmem:[#allocation6 + $0x4] sm:$0xf]
        %v431 = vld [vmem:[#allocation6 + $0x8] sm:$0xf]
        %v432 = vld [vmem:[#allocation6 + $0xc] sm:$0xf]
        %v433 = vld [vmem:[%s2] sm:$0x1]
        %v435 = vlaneseq
        %v436 = vshrl.u32 %v435, 7
        %v437 = vsub.s32 0, %v436
        %v438 = vrot.slane %v433, %v437
        %v444 = vunpack.c.l.b16 %v429
        %v445 = vunpack.c.l.b16 %v430
        %v446 = vunpack.c.l.b16 %v431
        %v447 = vunpack.c.l.b16 %v432
        %v448 = vpack.c.b16 %v445, %v444
        %v449 = vpack.c.b16 %v447, %v446
        %452 = vmatprep.subr.bf16.mxu0 0
        %453 = vmatpush1.bf16.msra.mxu0 0
        %454 = vmatprep.subr.bf16.mxu0 0
        %455 = vmatpush1.bf16.msra.mxu0 0
        %456 = vmatprep.subr.bf16.mxu0 0
        %457 = vmatpush1.bf16.msra.mxu0 0
        %458 = vmatprep.subr.bf16.mxu0 0
        %459 = vmatpush1.bf16.msra.mxu0 0
        %460 = vmatprep.subr.bf16.mxu0 0
        %461 = vmatpush1.bf16.msra.mxu0 0
        %462 = vmatprep.subr.bf16.mxu0 0
        %463 = vmatpush1.bf16.msra.mxu0 0
        %464 = vmatprep.subr.bf16.mxu0 0
        %465 = vmatpush1.bf16.msra.mxu0 %v449
        %466 = vmatprep.subr.bf16.mxu0 0
        %467 = vmatpush1.bf16.msra.mxu0 %v448
        %468 = vmatprep.subr.bf16.mxu0 0
        %469 = vmatpush2.bf16.msra.mxu0 0
        %470 = vmatprep.subr.bf16.mxu0 0
        %471 = vmatpush2.bf16.msra.mxu0 0
        %472 = vmatprep.subr.bf16.mxu0 0
        %473 = vmatpush2.bf16.msra.mxu0 0
        %474 = vmatprep.subr.bf16.mxu0 0
        %475 = vmatpush2.bf16.msra.mxu0 0
        %476 = vmatprep.subr.bf16.mxu0 0
        %477 = vmatpush2.bf16.msra.mxu0 0
        %478 = vmatprep.subr.bf16.mxu0 0
        %479 = vmatpush2.bf16.msra.mxu0 0
        %480 = vmatprep.subr.bf16.mxu0 0
        %481 = vmatpush2.bf16.msra.mxu0 0
        %482 = vmatprep.subr.bf16.mxu0 0
        %483 = vmatpush2.bf16.msra.mxu0 0
        %484 = vmatprep.mubr.bf16.mxu0 0
        %485 = vmatmul.mubr.bf16.gmra.mxu0 %v382
        %v486 = vpop.f32.mrf.mxu0
        %v487 = vadd.f32 %v438, %v486
        %v488 = vpop.f32.mrf.mxu0
        %v489 = vpop.f32.mrf.mxu0
        %v490 = vpop.f32.mrf.mxu0
        %491 = vdwg.mxu0
        %v492 = vmul.f32 %v487, 0.35355338
        %v493 = vpack.c.bf16 %v492, %v492
        %v494 = vlaneseq
        %v495 = vshrl.u32 %v494, 7
        %s496 = smul.u32 %s31, 8
        %v497 = vstv %s496
        %v498 = vadd.s32 %v495, %v497
        %v499 = vlaneseq
        %v500 = vand.u32 %v499, 127
        %s501 = sadd.s32 %s31, 1
        // While loop
        $region65: #{tpu_custom_call.1} parent=47 // loop_pre_header
          _
        $region66: #{tpu_custom_call.1} parent=47 // loop_header
          %s503 = sphi 0, %s505
          %p504 = scmp.ge.s32.totalorder %s503, %s501
          %v508 = vphi -inf, %v578
          %v509 = vphi -inf, %v700
          %v510 = vphi -inf, %v817
          %v511 = vphi -inf, %v934
          %v512 = vphi 0.0, %v589
          %v513 = vphi 0.0, %v711
          %v514 = vphi 0.0, %v828
          %v515 = vphi 0.0, %v945
          %v516 = vphi 0.0, %v644
          %v517 = vphi 0.0, %v762
          %v518 = vphi 0.0, %v879
          %v519 = vphi 0.0, %v996
        $region67: #{tpu_custom_call.1} parent=47 // loop_header_branch
          %507 = sbr.rel (%p504) target = $region71
        $region68: #{tpu_custom_call.1} parent=47 // loop_body
          %s520 = smul.addr %s503, 4
          %s521 = scalar_lea.vmem [#allocation2], %s520
          %v522 = vld [vmem:[%s521] sm:$0xf]
          %s523 = smul.u32 %s503, 8
          %v524 = vstv %s523
          %v525 = vadd.s32 %v500, %v524
          %vm526 = vcmp.le.s32.totalorder %v525, %v498
          %vm527 = vcmask 64512
          %v529 = vsel %vm527, %v493, 0
          %v532 = vsel %vm527, %v522, 0
          %534 = vmatprep.subr.bf16.mxu0 0
          %535 = vmatpush1.bf16.xpose.msra.mxu0 0
          %536 = vmatprep.subr.bf16.mxu0 0
          %537 = vmatpush1.bf16.xpose.msra.mxu0 0
          %538 = vmatprep.subr.bf16.mxu0 0
          %539 = vmatpush1.bf16.xpose.msra.mxu0 0
          %540 = vmatprep.subr.bf16.mxu0 0
          %541 = vmatpush1.bf16.xpose.msra.mxu0 0
          %542 = vmatprep.subr.bf16.mxu0 0
          %543 = vmatpush1.bf16.xpose.msra.mxu0 0
          %544 = vmatprep.subr.bf16.mxu0 0
          %545 = vmatpush1.bf16.xpose.msra.mxu0 0
          %546 = vmatprep.subr.bf16.mxu0 0
          %547 = vmatpush1.bf16.xpose.msra.mxu0 0
          %548 = vmatprep.subr.bf16.mxu0 0
          %549 = vmatpush1.bf16.xpose.msra.mxu0 %v532
          %550 = vmatprep.subr.bf16.mxu0 0
          %551 = vmatpush2.bf16.xpose.msra.mxu0 0
          %552 = vmatprep.subr.bf16.mxu0 0
          %553 = vmatpush2.bf16.xpose.msra.mxu0 0
          %554 = vmatprep.subr.bf16.mxu0 0
          %555 = vmatpush2.bf16.xpose.msra.mxu0 0
          %556 = vmatprep.subr.bf16.mxu0 0
          %557 = vmatpush2.bf16.xpose.msra.mxu0 0
          %558 = vmatprep.subr.bf16.mxu0 0
          %559 = vmatpush2.bf16.xpose.msra.mxu0 0
          %560 = vmatprep.subr.bf16.mxu0 0
          %561 = vmatpush2.bf16.xpose.msra.mxu0 0
          %562 = vmatprep.subr.bf16.mxu0 0
          %563 = vmatpush2.bf16.xpose.msra.mxu0 0
          %564 = vmatprep.subr.bf16.mxu0 0
          %565 = vmatpush2.bf16.xpose.msra.mxu0 0
          %566 = vmatprep.mubr.bf16.mxu0 0
          %567 = vmatmul.mubr.bf16.gmra.mxu0 %v529
          %v568 = vpop.f32.mrf.mxu0
          %v569 = vadd.f32 0.0, %v568
          %v570 = vpop.f32.mrf.mxu0
          %v571 = vpop.f32.mrf.mxu0
          %v572 = vpop.f32.mrf.mxu0
          %573 = vdwg.mxu0
          %v574 = vsel %vm526, %v569, -inf
          %v575 = vsel %vm527, %v574, -inf
          %576 = vmax.xlane.f32.xlu0 %v575
          %v577 = vpop.xlane.xlu0 %576
          %v578 = vmax.f32 %v508, %v577
          %v579 = vsub.f32 %v508, %v578
          %v580 = vmul.f32 %v579, 1.442695
          %v581 = vpow.pop %v580
          %v582 = vsub.f32 %v574, %v578
          %v583 = vmul.f32 %v582, 1.442695
          %v584 = vpow.pop %v583
          %v585 = vmul.f32 %v581, %v512
          %v586 = vsel %vm527, %v584, 0.0
          %587 = vadd.xlane.f32.xlu0 %v586
          %v588 = vpop.xlane.xlu0 %587
          %v589 = vadd.f32 %v585, %v588
          %v590 = vmul.f32 %v581, %v516
          %v591 = vpack.c.bf16 %v584, %v584
          %v593 = vunpack.c.l.b16 %v522
          %v594 = vpack.c.b16 %v593, %v593
          %595 = vrot.lane.b32.xlu0 %v594, 96
          %v596 = vpop.permute.xlu0 %595
          %v598 = vsel %vm527, %v591, 0
          %vm600 = vcmask 1043456
          %v602 = vsel %vm600, %v596, 0
          %604 = vmatprep.subr.bf16.mxu0 0
          %605 = vmatpush1.bf16.msra.mxu0 0
          %606 = vmatprep.subr.bf16.mxu0 0
          %607 = vmatpush1.bf16.msra.mxu0 0
          %608 = vmatprep.subr.bf16.mxu0 0
          %609 = vmatpush1.bf16.msra.mxu0 0
          %610 = vmatprep.subr.bf16.mxu0 0
          %611 = vmatpush1.bf16.msra.mxu0 0
          %612 = vmatprep.subr.bf16.mxu0 0
          %613 = vmatpush1.bf16.msra.mxu0 0
          %614 = vmatprep.subr.bf16.mxu0 0
          %615 = vmatpush1.bf16.msra.mxu0 0
          %616 = vmatprep.subr.bf16.mxu0 0
          %617 = vmatpush1.bf16.msra.mxu0 0
          %618 = vmatprep.subr.bf16.mxu0 0
          %619 = vmatpush1.bf16.msra.mxu0 %v602
          %620 = vmatprep.subr.bf16.mxu0 0
          %621 = vmatpush2.bf16.msra.mxu0 0
          %622 = vmatprep.subr.bf16.mxu0 0
          %623 = vmatpush2.bf16.msra.mxu0 0
          %624 = vmatprep.subr.bf16.mxu0 0
          %625 = vmatpush2.bf16.msra.mxu0 0
          %626 = vmatprep.subr.bf16.mxu0 0
          %627 = vmatpush2.bf16.msra.mxu0 0
          %628 = vmatprep.subr.bf16.mxu0 0
          %629 = vmatpush2.bf16.msra.mxu0 0
          %630 = vmatprep.subr.bf16.mxu0 0
          %631 = vmatpush2.bf16.msra.mxu0 0
          %632 = vmatprep.subr.bf16.mxu0 0
          %633 = vmatpush2.bf16.msra.mxu0 0
          %634 = vmatprep.subr.bf16.mxu0 0
          %635 = vmatpush2.bf16.msra.mxu0 0
          %636 = vmatprep.mubr.bf16.mxu0 0
          %637 = vmatmul.mubr.bf16.gmra.mxu0 %v598
          %v638 = vpop.f32.mrf.mxu0
          %v639 = vadd.f32 0.0, %v638
          %v640 = vpop.f32.mrf.mxu0
          %v641 = vpop.f32.mrf.mxu0
          %v642 = vpop.f32.mrf.mxu0
          %643 = vdwg.mxu0
          %v644 = vadd.f32 %v590, %v639
          %646 = vrot.lane.b32.xlu0 %v493, 120
          %v647 = vpop.permute.xlu0 %646
          %648 = vrot.lane.b32.xlu0 %v594, 120
          %v649 = vpop.permute.xlu0 %648
          %v651 = vsel %vm527, %v647, 0
          %v654 = vsel %vm527, %v649, 0
          %656 = vmatprep.subr.bf16.mxu0 0
          %657 = vmatpush1.bf16.xpose.msra.mxu0 0
          %658 = vmatprep.subr.bf16.mxu0 0
          %659 = vmatpush1.bf16.xpose.msra.mxu0 0
          %660 = vmatprep.subr.bf16.mxu0 0
          %661 = vmatpush1.bf16.xpose.msra.mxu0 0
          %662 = vmatprep.subr.bf16.mxu0 0
          %663 = vmatpush1.bf16.xpose.msra.mxu0 0
          %664 = vmatprep.subr.bf16.mxu0 0
          %665 = vmatpush1.bf16.xpose.msra.mxu0 0
          %666 = vmatprep.subr.bf16.mxu0 0
          %667 = vmatpush1.bf16.xpose.msra.mxu0 0
          %668 = vmatprep.subr.bf16.mxu0 0
          %669 = vmatpush1.bf16.xpose.msra.mxu0 0
          %670 = vmatprep.subr.bf16.mxu0 0
          %671 = vmatpush1.bf16.xpose.msra.mxu0 %v654
          %672 = vmatprep.subr.bf16.mxu0 0
          %673 = vmatpush2.bf16.xpose.msra.mxu0 0
          %674 = vmatprep.subr.bf16.mxu0 0
          %675 = vmatpush2.bf16.xpose.msra.mxu0 0
          %676 = vmatprep.subr.bf16.mxu0 0
          %677 = vmatpush2.bf16.xpose.msra.mxu0 0
          %678 = vmatprep.subr.bf16.mxu0 0
          %679 = vmatpush2.bf16.xpose.msra.mxu0 0
          %680 = vmatprep.subr.bf16.mxu0 0
          %681 = vmatpush2.bf16.xpose.msra.mxu0 0
          %682 = vmatprep.subr.bf16.mxu0 0
          %683 = vmatpush2.bf16.xpose.msra.mxu0 0
          %684 = vmatprep.subr.bf16.mxu0 0
          %685 = vmatpush2.bf16.xpose.msra.mxu0 0
          %686 = vmatprep.subr.bf16.mxu0 0
          %687 = vmatpush2.bf16.xpose.msra.mxu0 0
          %688 = vmatprep.mubr.bf16.mxu0 0
          %689 = vmatmul.mubr.bf16.gmra.mxu0 %v651
          %v690 = vpop.f32.mrf.mxu0
          %v691 = vadd.f32 0.0, %v690
          %v692 = vpop.f32.mrf.mxu0
          %v693 = vpop.f32.mrf.mxu0
          %v694 = vpop.f32.mrf.mxu0
          %695 = vdwg.mxu0
          %v696 = vsel %vm526, %v691, -inf
          %v697 = vsel %vm527, %v696, -inf
          %698 = vmax.xlane.f32.xlu0 %v697
          %v699 = vpop.xlane.xlu0 %698
          %v700 = vmax.f32 %v509, %v699
          %v701 = vsub.f32 %v509, %v700
          %v702 = vmul.f32 %v701, 1.442695
          %v703 = vpow.pop %v702
          %v704 = vsub.f32 %v696, %v700
          %v705 = vmul.f32 %v704, 1.442695
          %v706 = vpow.pop %v705
          %v707 = vmul.f32 %v703, %v513
          %v708 = vsel %vm527, %v706, 0.0
          %709 = vadd.xlane.f32.xlu0 %v708
          %v710 = vpop.xlane.xlu0 %709
          %v711 = vadd.f32 %v707, %v710
          %v712 = vmul.f32 %v703, %v517
          %v713 = vpack.c.bf16 %v706, %v706
          %714 = vrot.lane.b32.xlu0 %v594, 88
          %v715 = vpop.permute.xlu0 %714
          %v717 = vsel %vm527, %v713, 0
          %v720 = vsel %vm600, %v715, 0
          %722 = vmatprep.subr.bf16.mxu0 0
          %723 = vmatpush1.bf16.msra.mxu0 0
          %724 = vmatprep.subr.bf16.mxu0 0
          %725 = vmatpush1.bf16.msra.mxu0 0
          %726 = vmatprep.subr.bf16.mxu0 0
          %727 = vmatpush1.bf16.msra.mxu0 0
          %728 = vmatprep.subr.bf16.mxu0 0
          %729 = vmatpush1.bf16.msra.mxu0 0
          %730 = vmatprep.subr.bf16.mxu0 0
          %731 = vmatpush1.bf16.msra.mxu0 0
          %732 = vmatprep.subr.bf16.mxu0 0
          %733 = vmatpush1.bf16.msra.mxu0 0
          %734 = vmatprep.subr.bf16.mxu0 0
          %735 = vmatpush1.bf16.msra.mxu0 0
          %736 = vmatprep.subr.bf16.mxu0 0
          %737 = vmatpush1.bf16.msra.mxu0 %v720
          %738 = vmatprep.subr.bf16.mxu0 0
          %739 = vmatpush2.bf16.msra.mxu0 0
          %740 = vmatprep.subr.bf16.mxu0 0
          %741 = vmatpush2.bf16.msra.mxu0 0
          %742 = vmatprep.subr.bf16.mxu0 0
          %743 = vmatpush2.bf16.msra.mxu0 0
          %744 = vmatprep.subr.bf16.mxu0 0
          %745 = vmatpush2.bf16.msra.mxu0 0
          %746 = vmatprep.subr.bf16.mxu0 0
          %747 = vmatpush2.bf16.msra.mxu0 0
          %748 = vmatprep.subr.bf16.mxu0 0
          %749 = vmatpush2.bf16.msra.mxu0 0
          %750 = vmatprep.subr.bf16.mxu0 0
          %751 = vmatpush2.bf16.msra.mxu0 0
          %752 = vmatprep.subr.bf16.mxu0 0
          %753 = vmatpush2.bf16.msra.mxu0 0
          %754 = vmatprep.mubr.bf16.mxu0 0
          %755 = vmatmul.mubr.bf16.gmra.mxu0 %v717
          %v756 = vpop.f32.mrf.mxu0
          %v757 = vadd.f32 0.0, %v756
          %v758 = vpop.f32.mrf.mxu0
          %v759 = vpop.f32.mrf.mxu0
          %v760 = vpop.f32.mrf.mxu0
          %761 = vdwg.mxu0
          %v762 = vadd.f32 %v712, %v757
          %763 = vrot.lane.b32.xlu0 %v493, 112
          %v764 = vpop.permute.xlu0 %763
          %765 = vrot.lane.b32.xlu0 %v594, 112
          %v766 = vpop.permute.xlu0 %765
          %v768 = vsel %vm527, %v764, 0
          %v771 = vsel %vm527, %v766, 0
          %773 = vmatprep.subr.bf16.mxu0 0
          %774 = vmatpush1.bf16.xpose.msra.mxu0 0
          %775 = vmatprep.subr.bf16.mxu0 0
          %776 = vmatpush1.bf16.xpose.msra.mxu0 0
          %777 = vmatprep.subr.bf16.mxu0 0
          %778 = vmatpush1.bf16.xpose.msra.mxu0 0
          %779 = vmatprep.subr.bf16.mxu0 0
          %780 = vmatpush1.bf16.xpose.msra.mxu0 0
          %781 = vmatprep.subr.bf16.mxu0 0
          %782 = vmatpush1.bf16.xpose.msra.mxu0 0
          %783 = vmatprep.subr.bf16.mxu0 0
          %784 = vmatpush1.bf16.xpose.msra.mxu0 0
          %785 = vmatprep.subr.bf16.mxu0 0
          %786 = vmatpush1.bf16.xpose.msra.mxu0 0
          %787 = vmatprep.subr.bf16.mxu0 0
          %788 = vmatpush1.bf16.xpose.msra.mxu0 %v771
          %789 = vmatprep.subr.bf16.mxu0 0
          %790 = vmatpush2.bf16.xpose.msra.mxu0 0
          %791 = vmatprep.subr.bf16.mxu0 0
          %792 = vmatpush2.bf16.xpose.msra.mxu0 0
          %793 = vmatprep.subr.bf16.mxu0 0
          %794 = vmatpush2.bf16.xpose.msra.mxu0 0
          %795 = vmatprep.subr.bf16.mxu0 0
          %796 = vmatpush2.bf16.xpose.msra.mxu0 0
          %797 = vmatprep.subr.bf16.mxu0 0
          %798 = vmatpush2.bf16.xpose.msra.mxu0 0
          %799 = vmatprep.subr.bf16.mxu0 0
          %800 = vmatpush2.bf16.xpose.msra.mxu0 0
          %801 = vmatprep.subr.bf16.mxu0 0
          %802 = vmatpush2.bf16.xpose.msra.mxu0 0
          %803 = vmatprep.subr.bf16.mxu0 0
          %804 = vmatpush2.bf16.xpose.msra.mxu0 0
          %805 = vmatprep.mubr.bf16.mxu0 0
          %806 = vmatmul.mubr.bf16.gmra.mxu0 %v768
          %v807 = vpop.f32.mrf.mxu0
          %v808 = vadd.f32 0.0, %v807
          %v809 = vpop.f32.mrf.mxu0
          %v810 = vpop.f32.mrf.mxu0
          %v811 = vpop.f32.mrf.mxu0
          %812 = vdwg.mxu0
          %v813 = vsel %vm526, %v808, -inf
          %v814 = vsel %vm527, %v813, -inf
          %815 = vmax.xlane.f32.xlu0 %v814
          %v816 = vpop.xlane.xlu0 %815
          %v817 = vmax.f32 %v510, %v816
          %v818 = vsub.f32 %v510, %v817
          %v819 = vmul.f32 %v818, 1.442695
          %v820 = vpow.pop %v819
          %v821 = vsub.f32 %v813, %v817
          %v822 = vmul.f32 %v821, 1.442695
          %v823 = vpow.pop %v822
          %v824 = vmul.f32 %v820, %v514
          %v825 = vsel %vm527, %v823, 0.0
          %826 = vadd.xlane.f32.xlu0 %v825
          %v827 = vpop.xlane.xlu0 %826
          %v828 = vadd.f32 %v824, %v827
          %v829 = vmul.f32 %v820, %v518
          %v830 = vpack.c.bf16 %v823, %v823
          %831 = vrot.lane.b32.xlu0 %v594, 80
          %v832 = vpop.permute.xlu0 %831
          %v834 = vsel %vm527, %v830, 0
          %v837 = vsel %vm600, %v832, 0
          %839 = vmatprep.subr.bf16.mxu0 0
          %840 = vmatpush1.bf16.msra.mxu0 0
          %841 = vmatprep.subr.bf16.mxu0 0
          %842 = vmatpush1.bf16.msra.mxu0 0
          %843 = vmatprep.subr.bf16.mxu0 0
          %844 = vmatpush1.bf16.msra.mxu0 0
          %845 = vmatprep.subr.bf16.mxu0 0
          %846 = vmatpush1.bf16.msra.mxu0 0
          %847 = vmatprep.subr.bf16.mxu0 0
          %848 = vmatpush1.bf16.msra.mxu0 0
          %849 = vmatprep.subr.bf16.mxu0 0
          %850 = vmatpush1.bf16.msra.mxu0 0
          %851 = vmatprep.subr.bf16.mxu0 0
          %852 = vmatpush1.bf16.msra.mxu0 0
          %853 = vmatprep.subr.bf16.mxu0 0
          %854 = vmatpush1.bf16.msra.mxu0 %v837
          %855 = vmatprep.subr.bf16.mxu0 0
          %856 = vmatpush2.bf16.msra.mxu0 0
          %857 = vmatprep.subr.bf16.mxu0 0
          %858 = vmatpush2.bf16.msra.mxu0 0
          %859 = vmatprep.subr.bf16.mxu0 0
          %860 = vmatpush2.bf16.msra.mxu0 0
          %861 = vmatprep.subr.bf16.mxu0 0
          %862 = vmatpush2.bf16.msra.mxu0 0
          %863 = vmatprep.subr.bf16.mxu0 0
          %864 = vmatpush2.bf16.msra.mxu0 0
          %865 = vmatprep.subr.bf16.mxu0 0
          %866 = vmatpush2.bf16.msra.mxu0 0
          %867 = vmatprep.subr.bf16.mxu0 0
          %868 = vmatpush2.bf16.msra.mxu0 0
          %869 = vmatprep.subr.bf16.mxu0 0
          %870 = vmatpush2.bf16.msra.mxu0 0
          %871 = vmatprep.mubr.bf16.mxu0 0
          %872 = vmatmul.mubr.bf16.gmra.mxu0 %v834
          %v873 = vpop.f32.mrf.mxu0
          %v874 = vadd.f32 0.0, %v873
          %v875 = vpop.f32.mrf.mxu0
          %v876 = vpop.f32.mrf.mxu0
          %v877 = vpop.f32.mrf.mxu0
          %878 = vdwg.mxu0
          %v879 = vadd.f32 %v829, %v874
          %880 = vrot.lane.b32.xlu0 %v493, 104
          %v881 = vpop.permute.xlu0 %880
          %882 = vrot.lane.b32.xlu0 %v594, 104
          %v883 = vpop.permute.xlu0 %882
          %v885 = vsel %vm527, %v881, 0
          %v888 = vsel %vm527, %v883, 0
          %890 = vmatprep.subr.bf16.mxu0 0
          %891 = vmatpush1.bf16.xpose.msra.mxu0 0
          %892 = vmatprep.subr.bf16.mxu0 0
          %893 = vmatpush1.bf16.xpose.msra.mxu0 0
          %894 = vmatprep.subr.bf16.mxu0 0
          %895 = vmatpush1.bf16.xpose.msra.mxu0 0
          %896 = vmatprep.subr.bf16.mxu0 0
          %897 = vmatpush1.bf16.xpose.msra.mxu0 0
          %898 = vmatprep.subr.bf16.mxu0 0
          %899 = vmatpush1.bf16.xpose.msra.mxu0 0
          %900 = vmatprep.subr.bf16.mxu0 0
          %901 = vmatpush1.bf16.xpose.msra.mxu0 0
          %902 = vmatprep.subr.bf16.mxu0 0
          %903 = vmatpush1.bf16.xpose.msra.mxu0 0
          %904 = vmatprep.subr.bf16.mxu0 0
          %905 = vmatpush1.bf16.xpose.msra.mxu0 %v888
          %906 = vmatprep.subr.bf16.mxu0 0
          %907 = vmatpush2.bf16.xpose.msra.mxu0 0
          %908 = vmatprep.subr.bf16.mxu0 0
          %909 = vmatpush2.bf16.xpose.msra.mxu0 0
          %910 = vmatprep.subr.bf16.mxu0 0
          %911 = vmatpush2.bf16.xpose.msra.mxu0 0
          %912 = vmatprep.subr.bf16.mxu0 0
          %913 = vmatpush2.bf16.xpose.msra.mxu0 0
          %914 = vmatprep.subr.bf16.mxu0 0
          %915 = vmatpush2.bf16.xpose.msra.mxu0 0
          %916 = vmatprep.subr.bf16.mxu0 0
          %917 = vmatpush2.bf16.xpose.msra.mxu0 0
          %918 = vmatprep.subr.bf16.mxu0 0
          %919 = vmatpush2.bf16.xpose.msra.mxu0 0
          %920 = vmatprep.subr.bf16.mxu0 0
          %921 = vmatpush2.bf16.xpose.msra.mxu0 0
          %922 = vmatprep.mubr.bf16.mxu0 0
          %923 = vmatmul.mubr.bf16.gmra.mxu0 %v885
          %v924 = vpop.f32.mrf.mxu0
          %v925 = vadd.f32 0.0, %v924
          %v926 = vpop.f32.mrf.mxu0
          %v927 = vpop.f32.mrf.mxu0
          %v928 = vpop.f32.mrf.mxu0
          %929 = vdwg.mxu0
          %v930 = vsel %vm526, %v925, -inf
          %v931 = vsel %vm527, %v930, -inf
          %932 = vmax.xlane.f32.xlu0 %v931
          %v933 = vpop.xlane.xlu0 %932
          %v934 = vmax.f32 %v511, %v933
          %v935 = vsub.f32 %v511, %v934
          %v936 = vmul.f32 %v935, 1.442695
          %v937 = vpow.pop %v936
          %v938 = vsub.f32 %v930, %v934
          %v939 = vmul.f32 %v938, 1.442695
          %v940 = vpow.pop %v939
          %v941 = vmul.f32 %v937, %v515
          %v942 = vsel %vm527, %v940, 0.0
          %943 = vadd.xlane.f32.xlu0 %v942
          %v944 = vpop.xlane.xlu0 %943
          %v945 = vadd.f32 %v941, %v944
          %v946 = vmul.f32 %v937, %v519
          %v947 = vpack.c.bf16 %v940, %v940
          %948 = vrot.lane.b32.xlu0 %v594, 72
          %v949 = vpop.permute.xlu0 %948
          %v951 = vsel %vm527, %v947, 0
          %v954 = vsel %vm600, %v949, 0
          %956 = vmatprep.subr.bf16.mxu0 0
          %957 = vmatpush1.bf16.msra.mxu0 0
          %958 = vmatprep.subr.bf16.mxu0 0
          %959 = vmatpush1.bf16.msra.mxu0 0
          %960 = vmatprep.subr.bf16.mxu0 0
          %961 = vmatpush1.bf16.msra.mxu0 0
          %962 = vmatprep.subr.bf16.mxu0 0
          %963 = vmatpush1.bf16.msra.mxu0 0
          %964 = vmatprep.subr.bf16.mxu0 0
          %965 = vmatpush1.bf16.msra.mxu0 0
          %966 = vmatprep.subr.bf16.mxu0 0
          %967 = vmatpush1.bf16.msra.mxu0 0
          %968 = vmatprep.subr.bf16.mxu0 0
          %969 = vmatpush1.bf16.msra.mxu0 0
          %970 = vmatprep.subr.bf16.mxu0 0
          %971 = vmatpush1.bf16.msra.mxu0 %v954
          %972 = vmatprep.subr.bf16.mxu0 0
          %973 = vmatpush2.bf16.msra.mxu0 0
          %974 = vmatprep.subr.bf16.mxu0 0
          %975 = vmatpush2.bf16.msra.mxu0 0
          %976 = vmatprep.subr.bf16.mxu0 0
          %977 = vmatpush2.bf16.msra.mxu0 0
          %978 = vmatprep.subr.bf16.mxu0 0
          %979 = vmatpush2.bf16.msra.mxu0 0
          %980 = vmatprep.subr.bf16.mxu0 0
          %981 = vmatpush2.bf16.msra.mxu0 0
          %982 = vmatprep.subr.bf16.mxu0 0
          %983 = vmatpush2.bf16.msra.mxu0 0
          %984 = vmatprep.subr.bf16.mxu0 0
          %985 = vmatpush2.bf16.msra.mxu0 0
          %986 = vmatprep.subr.bf16.mxu0 0
          %987 = vmatpush2.bf16.msra.mxu0 0
          %988 = vmatprep.mubr.bf16.mxu0 0
          %989 = vmatmul.mubr.bf16.gmra.mxu0 %v951
          %v990 = vpop.f32.mrf.mxu0
          %v991 = vadd.f32 0.0, %v990
          %v992 = vpop.f32.mrf.mxu0
          %v993 = vpop.f32.mrf.mxu0
          %v994 = vpop.f32.mrf.mxu0
          %995 = vdwg.mxu0
          %v996 = vadd.f32 %v946, %v991
        $region69: #{tpu_custom_call.1} parent=47 // loop_footer
          %s505 = sadd.s32 %s503, 1
        $region70: #{tpu_custom_call.1} parent=47 // loop_footer_branch
          %502 = sbr.rel target = $region66
        $region71: #{tpu_custom_call.1} parent=47 // loop_exit
          _
        %v997 = vrcp.pop %v512
        %v998 = vmul.f32 %v516, %v997
        %v999 = vpack.c.bf16 %v998, %v998
        %v1000 = vrcp.pop %v513
        %v1001 = vmul.f32 %v517, %v1000
        %v1002 = vpack.c.bf16 %v1001, %v1001
        %v1003 = vrcp.pop %v514
        %v1004 = vmul.f32 %v518, %v1003
        %v1005 = vpack.c.bf16 %v1004, %v1004
        %v1006 = vrcp.pop %v515
        %v1007 = vmul.f32 %v519, %v1006
        %v1008 = vpack.c.bf16 %v1007, %v1007
        %1010 = vrot.lane.b32.xlu0 %v1002, 8
        %v1011 = vpop.permute.xlu0 %1010
        %1013 = vrot.lane.b32.xlu0 %v1005, 16
        %v1014 = vpop.permute.xlu0 %1013
        %1016 = vrot.lane.b32.xlu0 %v1008, 24
        %v1017 = vpop.permute.xlu0 %1016
        %vm1018 = vcmask 64512
        %v1021 = vsel %vm1018, %v999, %v1011
        %vm1022 = vcmask 130048
        %v1024 = vsel %vm1022, %v1021, %v1014
        %vm1025 = vcmask 195584
        %v1027 = vsel %vm1025, %v1024, %v1017
        %v1028 = vld [vmem:[#allocation9] sm:$0xf]
        %v1029 = vld [vmem:[#allocation9 + $0x4] sm:$0xf]
        %v1030 = vld [vmem:[#allocation9 + $0x8] sm:$0xf]
        %v1031 = vld [vmem:[#allocation9 + $0xc] sm:$0xf]
        %v1032 = vld [vmem:[%s6] sm:$0x1]
        %v1034 = vlaneseq
        %v1035 = vshrl.u32 %v1034, 7
        %v1036 = vsub.s32 0, %v1035
        %v1037 = vrot.slane %v1032, %v1036
        %v1043 = vunpack.c.l.b16 %v1028
        %v1044 = vunpack.c.l.b16 %v1029
        %v1045 = vunpack.c.l.b16 %v1030
        %v1046 = vunpack.c.l.b16 %v1031
        %v1047 = vpack.c.b16 %v1044, %v1043
        %v1048 = vpack.c.b16 %v1046, %v1045
        %v1051 = vsel %vm380, %v1027, 0
        %1053 = vmatprep.subr.bf16.mxu0 0
        %1054 = vmatpush1.bf16.msra.mxu0 0
        %1055 = vmatprep.subr.bf16.mxu0 0
        %1056 = vmatpush1.bf16.msra.mxu0 0
        %1057 = vmatprep.subr.bf16.mxu0 0
        %1058 = vmatpush1.bf16.msra.mxu0 0
        %1059 = vmatprep.subr.bf16.mxu0 0
        %1060 = vmatpush1.bf16.msra.mxu0 0
        %1061 = vmatprep.subr.bf16.mxu0 0
        %1062 = vmatpush1.bf16.msra.mxu0 0
        %1063 = vmatprep.subr.bf16.mxu0 0
        %1064 = vmatpush1.bf16.msra.mxu0 0
        %1065 = vmatprep.subr.bf16.mxu0 0
        %1066 = vmatpush1.bf16.msra.mxu0 %v1048
        %1067 = vmatprep.subr.bf16.mxu0 0
        %1068 = vmatpush1.bf16.msra.mxu0 %v1047
        %1069 = vmatprep.subr.bf16.mxu0 0
        %1070 = vmatpush2.bf16.msra.mxu0 0
        %1071 = vmatprep.subr.bf16.mxu0 0
        %1072 = vmatpush2.bf16.msra.mxu0 0
        %1073 = vmatprep.subr.bf16.mxu0 0
        %1074 = vmatpush2.bf16.msra.mxu0 0
        %1075 = vmatprep.subr.bf16.mxu0 0
        %1076 = vmatpush2.bf16.msra.mxu0 0
        %1077 = vmatprep.subr.bf16.mxu0 0
        %1078 = vmatpush2.bf16.msra.mxu0 0
        %1079 = vmatprep.subr.bf16.mxu0 0
        %1080 = vmatpush2.bf16.msra.mxu0 0
        %1081 = vmatprep.subr.bf16.mxu0 0
        %1082 = vmatpush2.bf16.msra.mxu0 0
        %1083 = vmatprep.subr.bf16.mxu0 0
        %1084 = vmatpush2.bf16.msra.mxu0 0
        %1085 = vmatprep.mubr.bf16.mxu0 0
        %1086 = vmatmul.mubr.bf16.gmra.mxu0 %v1051
        %v1087 = vpop.f32.mrf.mxu0
        %v1088 = vadd.f32 %v1037, %v1087
        %v1089 = vpop.f32.mrf.mxu0
        %v1090 = vpop.f32.mrf.mxu0
        %v1091 = vpop.f32.mrf.mxu0
        %1092 = vdwg.mxu0
        %1093 = vst.msk [vmem:[%s354] sm:$0xff] %vm380, %v1088
        %s1094 = sand.u32 %s202, 1
        %s1095 = scalar_lea.sflag [#allocation5], %s1094
        %s1096 = sand.u32 %s202, 1
        %s1097 = smul.addr %s1096, 8
        %s1098 = scalar_lea.vmem [#allocation11], %s1097
        // Predicated region
        $region72: #{tpu_custom_call.1} parent=47 // pred_check
          %p1099 = pneg %p212
        $region73: #{tpu_custom_call.1} parent=47 // pred_check_branch
          %1101 = sbr.rel (%p1099) target = $region75
        $region74: #{tpu_custom_call.1} parent=47 // pred_region
          %s1103 = ssub.s32 128, 128
          %1104 = vsyncadd %s1095, %s1103
          %s1105 = sadd.s32 %s31, %s30
          %s1106 = smul.addr %s1105, 128
          %s1107 = scalar_lea.hbm %s7, %s1106
          %s1109 = sshll.u32 %s1098, 4
          %s1110 = int_to_ptr.vmem [resolvable:$true] %s1109
          %1112 = dma.vmem_to_hbm [thread:$0]  %s1110, 128, %s1107, %s1095
        $region75: #{tpu_custom_call.1} parent=47 // pred_fallthru
          _
      $region48: #{tpu_custom_call.1} parent=5 // pred_fallthru
        _
      %p1113 = scmp.le.s32.totalorder 2, %s21
      // Predicated region
      $region76: #{tpu_custom_call.1} parent=5 // pred_check
        %p1114 = pneg %p1113
      $region77: #{tpu_custom_call.1} parent=5 // pred_check_branch
        %1116 = sbr.rel (%p1114) target = $region79
      $region78: #{tpu_custom_call.1} parent=5 // pred_region
        %s1117 = ssub.s32 %s21, 2
        // Predicated region
        $region80: #{tpu_custom_call.1} parent=78 // pred_check
          %p1118 = pneg %p218
        $region81: #{tpu_custom_call.1} parent=78 // pred_check_branch
          %1120 = sbr.rel (%p1118) target = $region83
        $region82: #{tpu_custom_call.1} parent=78 // pred_region
          %s1121 = sand.u32 %s203, 1
          %s1122 = scalar_lea.sflag [#allocation5], %s1121
          %s1123 = sand.u32 %s203, 1
          %s1124 = smul.addr %s1123, 8
          %s1125 = scalar_lea.vmem [#allocation11], %s1124
          %1126 = dma.done %s1122, 128
        $region83: #{tpu_custom_call.1} parent=78 // pred_fallthru
          _
      $region79: #{tpu_custom_call.1} parent=5 // pred_fallthru
        _
    $region6: #{tpu_custom_call.1} parent=1 // loop_footer
      %s25 = sadd.s32 1, %s21
    $region7: #{tpu_custom_call.1} parent=1 // loop_footer_branch
      %20 = sbr.rel target = $region3
    $region8: #{tpu_custom_call.1} parent=1 // loop_exit
      _
    %1127 = vsyncpa [#allocation4], 1
    %s1128 = scalar_lea.sflag [#allocation4], 1
    %1129 = vsyncpa %s1128, 1
    %1130 = vsyncpa [#allocation7], 1
    %1131 = vsyncpa [#allocation10], 1
    %1132 = vsyncpa [#allocation5], 1
    %s1133 = scalar_lea.sflag [#allocation5], 1
    %1134 = vsyncpa %s1133, 1

</llo_original>
